<compile_context>
chip_gen: v6e
topology: v6e:2x2x1
jax: 0.10.0
libtpu: 0.0.40
codegen_flags: <defaults>
</compile_context>

<pallas_src>
import jax
import jax.numpy as jnp
from jax.experimental import pallas as pl
from jax.experimental.pallas import tpu as pltpu

NUM_INPUTS = 16    # num_inputs
HIDDEN1 = 30
HIDDEN2 = 20
NUM_OUTPUTS = 4    # num_outputs
BATCH = 500        # demo batch (not a multiple of 8 -> exercises ragged block)
MAX_TILE_B = 512   # cap per-step batch tile (vreg pressure, not VMEM, is the ceiling)


def mlp_kernel(x_ref, w1_ref, b1_ref, w2_ref, b2_ref, w3_ref, b3_ref, o_ref):
    # layer1: cast the streamed f32 x to bf16 on the VPU (hidden under DMA
    # slack), bf16 x bf16 on the MXU with f32 accumulation; bias+ReLU in f32.
    h1 = jnp.dot(x_ref[...].astype(jnp.bfloat16), w1_ref[...],
                 preferred_element_type=jnp.float32)
    h1 = jnp.maximum(h1 + b1_ref[...], 0.0)
    # layer2 + relu2 (bf16 MXU operands, f32 accumulate / bias / ReLU).
    h2 = jnp.dot(h1.astype(jnp.bfloat16), w2_ref[...],
                 preferred_element_type=jnp.float32)
    h2 = jnp.maximum(h2 + b2_ref[...], 0.0)
    # layer3 (no activation in forward(); sigmoid is defined but unused).
    out = jnp.dot(h2.astype(jnp.bfloat16), w3_ref[...],
                  preferred_element_type=jnp.float32)
    o_ref[...] = (out + b3_ref[...]).astype(o_ref.dtype)


def mlp_forward(x, w1, b1, w2, b2, w3, b3, *, max_tile_b=MAX_TILE_B):
    B, _ = x.shape
    # One grid step whenever the batch fits in a single (sublane-rounded) tile.
    tile_b = min(max_tile_b, ((B + 7) // 8) * 8)   # multiple of 8 sublanes
    n_tiles = pl.cdiv(B, tile_b)
    b_pad = n_tiles * tile_b

    # Weights/biases: full-array blocks with a constant block index -> loaded
    # once and VMEM-resident across every grid step.
    resident = lambda arr: pl.BlockSpec(arr.shape, lambda i: (0, 0))

    flops = 2 * B * (NUM_INPUTS * HIDDEN1 + HIDDEN1 * HIDDEN2 + HIDDEN2 * NUM_OUTPUTS)
    param_bytes = sum(int(a.size) * a.dtype.itemsize for a in (w1, b1, w2, b2, w3, b3))
    bytes_accessed = int(x.size) * x.dtype.itemsize \
        + b_pad * NUM_OUTPUTS * 4 + param_bytes

    out = pl.pallas_call(
        mlp_kernel,
        out_shape=jax.ShapeDtypeStruct((b_pad, NUM_OUTPUTS), jnp.float32),
        grid=(n_tiles,),
        in_specs=[
            pl.BlockSpec((tile_b, NUM_INPUTS), lambda i: (i, 0)),  # streamed x
            resident(w1), resident(b1),
            resident(w2), resident(b2),
            resident(w3), resident(b3),
        ],
        out_specs=pl.BlockSpec((tile_b, NUM_OUTPUTS), lambda i: (i, 0)),
        compiler_params=pltpu.CompilerParams(
            dimension_semantics=("parallel",)),
        cost_estimate=pl.CostEstimate(
            flops=flops, transcendentals=0, bytes_accessed=bytes_accessed),
    )(x, w1, b1, w2, b2, w3, b3)
    # Rows >= B of the padded output come from an out-of-range (uninitialized)
    # tail of the last input block; discard them here.
    return out[:B]


def init_params(key):
    # Deterministic init mimicking torch.nn.Linear's U(-1/sqrt(fan_in), +1/sqrt(fan_in)).
    def linear(key, fan_in, fan_out):
        kw, kb = jax.random.split(key)
        bound = 1.0 / jnp.sqrt(fan_in)
        # stored already transposed: (in, out) so the kernel computes x @ W + b
        w = jax.random.uniform(kw, (fan_in, fan_out), jnp.float32, -bound, bound)
        b = jax.random.uniform(kb, (1, fan_out), jnp.float32, -bound, bound)
        return w.astype(jnp.bfloat16), b   # MXU operands bf16, biases f32

    k1, k2, k3 = jax.random.split(key, 3)
    w1, b1 = linear(k1, NUM_INPUTS, HIDDEN1)
    w2, b2 = linear(k2, HIDDEN1, HIDDEN2)
    w3, b3 = linear(k3, HIDDEN2, NUM_OUTPUTS)
    return w1, b1, w2, b2, w3, b3


def reference_forward(x, w1, b1, w2, b2, w3, b3):
    # Apply the same bf16 rounding of MXU operands as the kernel; f32 math.
    r = lambda a: a.astype(jnp.bfloat16).astype(jnp.float32)
    h1 = jnp.maximum(r(x) @ r(w1) + b1, 0.0)
    h2 = jnp.maximum(r(h1) @ r(w2) + b2, 0.0)
    return r(h2) @ r(w3) + b3


if __name__ == "__main__":
    key = jax.random.PRNGKey(0)
    kx, kp = jax.random.split(key)
    x = jax.random.normal(kx, (BATCH, NUM_INPUTS), jnp.float32)
    params = init_params(kp)

    out = mlp_forward(x, *params)
    out = jax.block_until_ready(out)

    ref = reference_forward(x, *params)
    assert out.shape == (BATCH, NUM_OUTPUTS)
    assert jnp.allclose(out, ref, atol=1e-4, rtol=1e-4)
    print("KERNEL_OK")
</pallas_src>

<mosaic_0001>
module attributes {stable_mosaic.version = 11 : i64} {
  func.func @mlp_kernel(%arg0: i32, %arg1: memref<504x16xf32, #tpu.memory_space<vmem>>, %arg2: memref<16x30xbf16, #tpu.memory_space<vmem>>, %arg3: memref<1x30xf32, #tpu.memory_space<vmem>>, %arg4: memref<30x20xbf16, #tpu.memory_space<vmem>>, %arg5: memref<1x20xf32, #tpu.memory_space<vmem>>, %arg6: memref<20x4xbf16, #tpu.memory_space<vmem>>, %arg7: memref<1x4xf32, #tpu.memory_space<vmem>>, %arg8: memref<504x4xf32, #tpu.memory_space<vmem>>) attributes {dimension_semantics = [#tpu.dimension_semantics<parallel>], iteration_bounds = array<i64: 1>, scalar_prefetch = 0 : i64, scratch_operands = 0 : i64, tpu.core_type = #tpu.core_type<tc>, window_params = [{transform_indices = @transform_0, window_bounds = array<i64: 504, 16>}, {pipeline_mode = #tpu.pipeline_mode<synchronous>, transform_indices = @transform_1, window_bounds = array<i64: 16, 30>}, {pipeline_mode = #tpu.pipeline_mode<synchronous>, transform_indices = @transform_2, window_bounds = array<i64: 1, 30>}, {pipeline_mode = #tpu.pipeline_mode<synchronous>, transform_indices = @transform_3, window_bounds = array<i64: 30, 20>}, {pipeline_mode = #tpu.pipeline_mode<synchronous>, transform_indices = @transform_4, window_bounds = array<i64: 1, 20>}, {pipeline_mode = #tpu.pipeline_mode<synchronous>, transform_indices = @transform_5, window_bounds = array<i64: 20, 4>}, {pipeline_mode = #tpu.pipeline_mode<synchronous>, transform_indices = @transform_6, window_bounds = array<i64: 1, 4>}, {transform_indices = @transform_7, window_bounds = array<i64: 504, 4>}]} {
    %c0 = arith.constant 0 : index
    %c0_0 = arith.constant 0 : index
    %0 = vector.load %arg1[%c0, %c0_0] : memref<504x16xf32, #tpu.memory_space<vmem>>, vector<504x16xf32>
    %1 = arith.truncf %0 : vector<504x16xf32> to vector<504x16xbf16>
    %c0_1 = arith.constant 0 : index
    %c0_2 = arith.constant 0 : index
    %2 = vector.load %arg2[%c0_1, %c0_2] : memref<16x30xbf16, #tpu.memory_space<vmem>>, vector<16x30xbf16>
    %cst = arith.constant dense<0.000000e+00> : vector<504x30xf32>
    %3 = tpu.matmul %1, %2, %cst {dimension_numbers = #tpu.dot_dimension_numbers<[1], [0], [0], [1], [0, 0, 1, 1], [], []>} : vector<504x16xbf16>, vector<16x30xbf16>, vector<504x30xf32> -> vector<504x30xf32>
    %c0_3 = arith.constant 0 : index
    %c0_4 = arith.constant 0 : index
    %4 = vector.load %arg3[%c0_3, %c0_4] : memref<1x30xf32, #tpu.memory_space<vmem>>, vector<1x30xf32>
    %5 = vector.broadcast %4 : vector<1x30xf32> to vector<504x30xf32>
    %6 = arith.addf %3, %5 : vector<504x30xf32>
    %cst_5 = arith.constant 0.000000e+00 : f32
    %7 = vector.broadcast %cst_5 : f32 to vector<504x30xf32>
    %8 = arith.maximumf %6, %7 : vector<504x30xf32>
    %9 = arith.truncf %8 : vector<504x30xf32> to vector<504x30xbf16>
    %c0_6 = arith.constant 0 : index
    %c0_7 = arith.constant 0 : index
    %10 = vector.load %arg4[%c0_6, %c0_7] : memref<30x20xbf16, #tpu.memory_space<vmem>>, vector<30x20xbf16>
    %cst_8 = arith.constant dense<0.000000e+00> : vector<504x20xf32>
    %11 = tpu.matmul %9, %10, %cst_8 {dimension_numbers = #tpu.dot_dimension_numbers<[1], [0], [0], [1], [0, 0, 1, 1], [], []>} : vector<504x30xbf16>, vector<30x20xbf16>, vector<504x20xf32> -> vector<504x20xf32>
    %c0_9 = arith.constant 0 : index
    %c0_10 = arith.constant 0 : index
    %12 = vector.load %arg5[%c0_9, %c0_10] : memref<1x20xf32, #tpu.memory_space<vmem>>, vector<1x20xf32>
    %13 = vector.broadcast %12 : vector<1x20xf32> to vector<504x20xf32>
    %14 = arith.addf %11, %13 : vector<504x20xf32>
    %cst_11 = arith.constant 0.000000e+00 : f32
    %15 = vector.broadcast %cst_11 : f32 to vector<504x20xf32>
    %16 = arith.maximumf %14, %15 : vector<504x20xf32>
    %17 = arith.truncf %16 : vector<504x20xf32> to vector<504x20xbf16>
    %c0_12 = arith.constant 0 : index
    %c0_13 = arith.constant 0 : index
    %18 = vector.load %arg6[%c0_12, %c0_13] : memref<20x4xbf16, #tpu.memory_space<vmem>>, vector<20x4xbf16>
    %cst_14 = arith.constant dense<0.000000e+00> : vector<504x4xf32>
    %19 = tpu.matmul %17, %18, %cst_14 {dimension_numbers = #tpu.dot_dimension_numbers<[1], [0], [0], [1], [0, 0, 1, 1], [], []>} : vector<504x20xbf16>, vector<20x4xbf16>, vector<504x4xf32> -> vector<504x4xf32>
    %c0_15 = arith.constant 0 : index
    %c0_16 = arith.constant 0 : index
    %20 = vector.load %arg7[%c0_15, %c0_16] : memref<1x4xf32, #tpu.memory_space<vmem>>, vector<1x4xf32>
    %21 = vector.broadcast %20 : vector<1x4xf32> to vector<504x4xf32>
    %22 = arith.addf %19, %21 : vector<504x4xf32>
    %c0_17 = arith.constant 0 : index
    %c0_18 = arith.constant 0 : index
    %23 = vector.load %arg8[%c0_17, %c0_18] : memref<504x4xf32, #tpu.memory_space<vmem>>, vector<504x4xf32>
    tpu.vector_store %arg8[%c0_17, %c0_18], %22 {strides = array<i32>} : memref<504x4xf32, #tpu.memory_space<vmem>>, vector<504x4xf32>,
    return
  }
  func.func @transform_0(%arg0: i32) -> (i32, i32) {
    %c0_i32 = arith.constant 0 : i32
    %c0_i32_0 = arith.constant 0 : i32
    return %arg0, %c0_i32 : i32, i32
  }
  func.func @transform_1(%arg0: i32) -> (i32, i32) {
    %c0_i32 = arith.constant 0 : i32
    %c0_i32_0 = arith.constant 0 : i32
    %c0_i32_1 = arith.constant 0 : i32
    return %c0_i32, %c0_i32_0 : i32, i32
  }
  func.func @transform_2(%arg0: i32) -> (i32, i32) {
    %c0_i32 = arith.constant 0 : i32
    %c0_i32_0 = arith.constant 0 : i32
    %c0_i32_1 = arith.constant 0 : i32
    return %c0_i32, %c0_i32_0 : i32, i32
  }
  func.func @transform_3(%arg0: i32) -> (i32, i32) {
    %c0_i32 = arith.constant 0 : i32
    %c0_i32_0 = arith.constant 0 : i32
    %c0_i32_1 = arith.constant 0 : i32
    return %c0_i32, %c0_i32_0 : i32, i32
  }
  func.func @transform_4(%arg0: i32) -> (i32, i32) {
    %c0_i32 = arith.constant 0 : i32
    %c0_i32_0 = arith.constant 0 : i32
    %c0_i32_1 = arith.constant 0 : i32
    return %c0_i32, %c0_i32_0 : i32, i32
  }
  func.func @transform_5(%arg0: i32) -> (i32, i32) {
    %c0_i32 = arith.constant 0 : i32
    %c0_i32_0 = arith.constant 0 : i32
    %c0_i32_1 = arith.constant 0 : i32
    return %c0_i32, %c0_i32_0 : i32, i32
  }
  func.func @transform_6(%arg0: i32) -> (i32, i32) {
    %c0_i32 = arith.constant 0 : i32
    %c0_i32_0 = arith.constant 0 : i32
    %c0_i32_1 = arith.constant 0 : i32
    return %c0_i32, %c0_i32_0 : i32, i32
  }
  func.func @transform_7(%arg0: i32) -> (i32, i32) {
    %c0_i32 = arith.constant 0 : i32
    %c0_i32_0 = arith.constant 0 : i32
    return %arg0, %c0_i32 : i32, i32
  }
}

</mosaic_0001>

<llo_original>
// kernel: tpu_custom_call.1
$region0: #{tpu_custom_call.1}
  #allocation0 [shape = 'u32[]', space=smem, size = 0x4, offset = 0x4, fixed_abs, tag = 'smem constant byte address 0x4 - core index']
  #allocation1 [shape = 'u32[144,128]{1,0:T(1,128)}', space=vmem, size = 0x12000, scoped, tag = 'internal scratch']
  %s0 = inlined_call_operand.vmem [shape: f32[500,16], index: 0, kind: input, shape index: {}]
  %s1 = inlined_call_operand.vmem [shape: bf16[16,30], index: 1, kind: input, shape index: {}]
  %s2 = inlined_call_operand.vmem [shape: f32[1,30], index: 2, kind: input, shape index: {}]
  %s3 = inlined_call_operand.vmem [shape: bf16[30,20], index: 3, kind: input, shape index: {}]
  %s4 = inlined_call_operand.vmem [shape: f32[1,20], index: 4, kind: input, shape index: {}]
  %s5 = inlined_call_operand.vmem [shape: bf16[20,4], index: 5, kind: input, shape index: {}]
  %s6 = inlined_call_operand.vmem [shape: f32[1,4], index: 6, kind: input, shape index: {}]
  %s7 = inlined_call_operand.vmem [shape: f32[504,4], index: 7, kind: output, shape index: {}]
  %s8 = sld [smem:[#allocation0]]
  $region38: #{tpu_custom_call.1} parent=0
    _
  %s10 = ssub.s32 1, %s8
  %s11 = scalar_select 0, %s10, %s8
  // Predicated region
  $region2: #{tpu_custom_call.1} parent=0 // pred_check
    _
  $region3: #{tpu_custom_call.1} parent=0 // pred_check_branch
    %13 = sbr.rel (0) target = $region5
  $region4: #{tpu_custom_call.1} parent=0 // pred_region
    _
  $region5: #{tpu_custom_call.1} parent=0 // pred_fallthru
    _
  // Predicated region
  $region6: #{tpu_custom_call.1} parent=0 // pred_check
    _
  $region7: #{tpu_custom_call.1} parent=0 // pred_check_branch
    %15 = sbr.rel (0) target = $region9
  $region8: #{tpu_custom_call.1} parent=0 // pred_region
    _
  $region9: #{tpu_custom_call.1} parent=0 // pred_fallthru
    _
  // Predicated region
  $region10: #{tpu_custom_call.1} parent=0 // pred_check
    _
  $region11: #{tpu_custom_call.1} parent=0 // pred_check_branch
    %17 = sbr.rel (0) target = $region13
  $region12: #{tpu_custom_call.1} parent=0 // pred_region
    _
  $region13: #{tpu_custom_call.1} parent=0 // pred_fallthru
    _
  // Predicated region
  $region14: #{tpu_custom_call.1} parent=0 // pred_check
    _
  $region15: #{tpu_custom_call.1} parent=0 // pred_check_branch
    %19 = sbr.rel (0) target = $region17
  $region16: #{tpu_custom_call.1} parent=0 // pred_region
    _
  $region17: #{tpu_custom_call.1} parent=0 // pred_fallthru
    _
  // Predicated region
  $region18: #{tpu_custom_call.1} parent=0 // pred_check
    _
  $region19: #{tpu_custom_call.1} parent=0 // pred_check_branch
    %21 = sbr.rel (0) target = $region21
  $region20: #{tpu_custom_call.1} parent=0 // pred_region
    _
  $region21: #{tpu_custom_call.1} parent=0 // pred_fallthru
    _
  // Predicated region
  $region22: #{tpu_custom_call.1} parent=0 // pred_check
    _
  $region23: #{tpu_custom_call.1} parent=0 // pred_check_branch
    %23 = sbr.rel (0) target = $region25
  $region24: #{tpu_custom_call.1} parent=0 // pred_region
    _
  $region25: #{tpu_custom_call.1} parent=0 // pred_fallthru
    _
  // Predicated region
  $region26: #{tpu_custom_call.1} parent=0 // pred_check
    _
  $region27: #{tpu_custom_call.1} parent=0 // pred_check_branch
    %25 = sbr.rel (0) target = $region29
  $region28: #{tpu_custom_call.1} parent=0 // pred_region
    _
  $region29: #{tpu_custom_call.1} parent=0 // pred_fallthru
    _
  %v27 = vld [vmem:[%s0] sm:$0xff]
  %v28 = vld [vmem:[%s0 + $0x8] sm:$0xff]
  %v29 = vld [vmem:[%s0 + $0x10] sm:$0xff]
  %v30 = vld [vmem:[%s0 + $0x18] sm:$0xff]
  %v31 = vld [vmem:[%s0 + $0x20] sm:$0xff]
  %v32 = vld [vmem:[%s0 + $0x28] sm:$0xff]
  %v33 = vld [vmem:[%s0 + $0x30] sm:$0xff]
  %v34 = vld [vmem:[%s0 + $0x38] sm:$0xff]
  %v35 = vld [vmem:[%s0 + $0x40] sm:$0xff]
  %v36 = vld [vmem:[%s0 + $0x48] sm:$0xff]
  %v37 = vld [vmem:[%s0 + $0x50] sm:$0xff]
  %v38 = vld [vmem:[%s0 + $0x58] sm:$0xff]
  %v39 = vld [vmem:[%s0 + $0x60] sm:$0xff]
  %v40 = vld [vmem:[%s0 + $0x68] sm:$0xff]
  %v41 = vld [vmem:[%s0 + $0x70] sm:$0xff]
  %v42 = vld [vmem:[%s0 + $0x78] sm:$0xff]
  %v43 = vld [vmem:[%s0 + $0x80] sm:$0xff]
  %v44 = vld [vmem:[%s0 + $0x88] sm:$0xff]
  %v45 = vld [vmem:[%s0 + $0x90] sm:$0xff]
  %v46 = vld [vmem:[%s0 + $0x98] sm:$0xff]
  %v47 = vld [vmem:[%s0 + $0xa0] sm:$0xff]
  %v48 = vld [vmem:[%s0 + $0xa8] sm:$0xff]
  %v49 = vld [vmem:[%s0 + $0xb0] sm:$0xff]
  %v50 = vld [vmem:[%s0 + $0xb8] sm:$0xff]
  %v51 = vld [vmem:[%s0 + $0xc0] sm:$0xff]
  %v52 = vld [vmem:[%s0 + $0xc8] sm:$0xff]
  %v53 = vld [vmem:[%s0 + $0xd0] sm:$0xff]
  %v54 = vld [vmem:[%s0 + $0xd8] sm:$0xff]
  %v55 = vld [vmem:[%s0 + $0xe0] sm:$0xff]
  %v56 = vld [vmem:[%s0 + $0xe8] sm:$0xff]
  %v57 = vld [vmem:[%s0 + $0xf0] sm:$0xff]
  %v58 = vld [vmem:[%s0 + $0xf8] sm:$0xff]
  %v59 = vld [vmem:[%s0 + $0x100] sm:$0xff]
  %v60 = vld [vmem:[%s0 + $0x108] sm:$0xff]
  %v61 = vld [vmem:[%s0 + $0x110] sm:$0xff]
  %v62 = vld [vmem:[%s0 + $0x118] sm:$0xff]
  %v63 = vld [vmem:[%s0 + $0x120] sm:$0xff]
  %v64 = vld [vmem:[%s0 + $0x128] sm:$0xff]
  %v65 = vld [vmem:[%s0 + $0x130] sm:$0xff]
  %v66 = vld [vmem:[%s0 + $0x138] sm:$0xff]
  %v67 = vld [vmem:[%s0 + $0x140] sm:$0xff]
  %v68 = vld [vmem:[%s0 + $0x148] sm:$0xff]
  %v69 = vld [vmem:[%s0 + $0x150] sm:$0xff]
  %v70 = vld [vmem:[%s0 + $0x158] sm:$0xff]
  %v71 = vld [vmem:[%s0 + $0x160] sm:$0xff]
  %v72 = vld [vmem:[%s0 + $0x168] sm:$0xff]
  %v73 = vld [vmem:[%s0 + $0x170] sm:$0xff]
  %v74 = vld [vmem:[%s0 + $0x178] sm:$0xff]
  %v75 = vld [vmem:[%s0 + $0x180] sm:$0xff]
  %v76 = vld [vmem:[%s0 + $0x188] sm:$0xff]
  %v77 = vld [vmem:[%s0 + $0x190] sm:$0xff]
  %v78 = vld [vmem:[%s0 + $0x198] sm:$0xff]
  %v79 = vld [vmem:[%s0 + $0x1a0] sm:$0xff]
  %v80 = vld [vmem:[%s0 + $0x1a8] sm:$0xff]
  %v81 = vld [vmem:[%s0 + $0x1b0] sm:$0xff]
  %v82 = vld [vmem:[%s0 + $0x1b8] sm:$0xff]
  %v83 = vld [vmem:[%s0 + $0x1c0] sm:$0xff]
  %v84 = vld [vmem:[%s0 + $0x1c8] sm:$0xff]
  %v85 = vld [vmem:[%s0 + $0x1d0] sm:$0xff]
  %v86 = vld [vmem:[%s0 + $0x1d8] sm:$0xff]
  %v87 = vld [vmem:[%s0 + $0x1e0] sm:$0xff]
  %v88 = vld [vmem:[%s0 + $0x1e8] sm:$0xff]
  %v89 = vld [vmem:[%s0 + $0x1f0] sm:$0xff]
  %v90 = vpack.c.bf16 %v28, %v27
  %v91 = vpack.c.bf16 %v30, %v29
  %v92 = vpack.c.bf16 %v32, %v31
  %v93 = vpack.c.bf16 %v34, %v33
  %v94 = vpack.c.bf16 %v36, %v35
  %v95 = vpack.c.bf16 %v38, %v37
  %v96 = vpack.c.bf16 %v40, %v39
  %v97 = vpack.c.bf16 %v42, %v41
  %v98 = vpack.c.bf16 %v44, %v43
  %v99 = vpack.c.bf16 %v46, %v45
  %v100 = vpack.c.bf16 %v48, %v47
  %v101 = vpack.c.bf16 %v50, %v49
  %v102 = vpack.c.bf16 %v52, %v51
  %v103 = vpack.c.bf16 %v54, %v53
  %v104 = vpack.c.bf16 %v56, %v55
  %v105 = vpack.c.bf16 %v58, %v57
  %v106 = vpack.c.bf16 %v60, %v59
  %v107 = vpack.c.bf16 %v62, %v61
  %v108 = vpack.c.bf16 %v64, %v63
  %v109 = vpack.c.bf16 %v66, %v65
  %v110 = vpack.c.bf16 %v68, %v67
  %v111 = vpack.c.bf16 %v70, %v69
  %v112 = vpack.c.bf16 %v72, %v71
  %v113 = vpack.c.bf16 %v74, %v73
  %v114 = vpack.c.bf16 %v76, %v75
  %v115 = vpack.c.bf16 %v78, %v77
  %v116 = vpack.c.bf16 %v80, %v79
  %v117 = vpack.c.bf16 %v82, %v81
  %v118 = vpack.c.bf16 %v84, %v83
  %v119 = vpack.c.bf16 %v86, %v85
  %v120 = vpack.c.bf16 %v88, %v87
  %v121 = vpack.c.bf16 %v89, %v89
  %v122 = vld [vmem:[%s1] sm:$0xf]
  %v123 = vld [vmem:[%s1 + $0x4] sm:$0xf]
  %v124 = vld [vmem:[%s2] sm:$0x1]
  %v126 = vlaneseq
  %v127 = vshrl.u32 %v126, 7
  %v128 = vsub.s32 0, %v127
  %v129 = vrot.slane %v124, %v128
  %v133 = vunpack.c.l.b16 %v122
  %v134 = vunpack.c.l.b16 %v123
  %v135 = vpack.c.b16 %v134, %v133
  %vm137 = vcmask 130048
  %v139 = vsel %vm137, %v90, 0
  %v142 = vsel %vm137, %v91, 0
  %v145 = vsel %vm137, %v92, 0
  %v148 = vsel %vm137, %v93, 0
  %v151 = vsel %vm137, %v94, 0
  %v154 = vsel %vm137, %v95, 0
  %v157 = vsel %vm137, %v96, 0
  %v160 = vsel %vm137, %v97, 0
  %v163 = vsel %vm137, %v98, 0
  %v166 = vsel %vm137, %v99, 0
  %v169 = vsel %vm137, %v100, 0
  %v172 = vsel %vm137, %v101, 0
  %v175 = vsel %vm137, %v102, 0
  %v178 = vsel %vm137, %v103, 0
  %v181 = vsel %vm137, %v104, 0
  %v184 = vsel %vm137, %v105, 0
  %v187 = vsel %vm137, %v106, 0
  %v190 = vsel %vm137, %v107, 0
  %v193 = vsel %vm137, %v108, 0
  %v196 = vsel %vm137, %v109, 0
  %v199 = vsel %vm137, %v110, 0
  %v202 = vsel %vm137, %v111, 0
  %v205 = vsel %vm137, %v112, 0
  %v208 = vsel %vm137, %v113, 0
  %v211 = vsel %vm137, %v114, 0
  %v214 = vsel %vm137, %v115, 0
  %v217 = vsel %vm137, %v116, 0
  %v220 = vsel %vm137, %v117, 0
  %v223 = vsel %vm137, %v118, 0
  %v226 = vsel %vm137, %v119, 0
  %v229 = vsel %vm137, %v120, 0
  %v232 = vsel %vm137, %v121, 0
  %234 = vmatprep.subr.bf16.mxu0 0
  %235 = vmatpush1.bf16.msra.mxu0 0
  %236 = vmatprep.subr.bf16.mxu0 0
  %237 = vmatpush1.bf16.msra.mxu0 0
  %238 = vmatprep.subr.bf16.mxu0 0
  %239 = vmatpush1.bf16.msra.mxu0 0
  %240 = vmatprep.subr.bf16.mxu0 0
  %241 = vmatpush1.bf16.msra.mxu0 0
  %242 = vmatprep.subr.bf16.mxu0 0
  %243 = vmatpush1.bf16.msra.mxu0 0
  %244 = vmatprep.subr.bf16.mxu0 0
  %245 = vmatpush1.bf16.msra.mxu0 0
  %246 = vmatprep.subr.bf16.mxu0 0
  %247 = vmatpush1.bf16.msra.mxu0 0
  %248 = vmatprep.subr.bf16.mxu0 0
  %249 = vmatpush1.bf16.msra.mxu0 %v135
  %250 = vmatprep.subr.bf16.mxu0 0
  %251 = vmatpush2.bf16.msra.mxu0 0
  %252 = vmatprep.subr.bf16.mxu0 0
  %253 = vmatpush2.bf16.msra.mxu0 0
  %254 = vmatprep.subr.bf16.mxu0 0
  %255 = vmatpush2.bf16.msra.mxu0 0
  %256 = vmatprep.subr.bf16.mxu0 0
  %257 = vmatpush2.bf16.msra.mxu0 0
  %258 = vmatprep.subr.bf16.mxu0 0
  %259 = vmatpush2.bf16.msra.mxu0 0
  %260 = vmatprep.subr.bf16.mxu0 0
  %261 = vmatpush2.bf16.msra.mxu0 0
  %262 = vmatprep.subr.bf16.mxu0 0
  %263 = vmatpush2.bf16.msra.mxu0 0
  %264 = vmatprep.subr.bf16.mxu0 0
  %265 = vmatpush2.bf16.msra.mxu0 0
  %266 = vmatprep.mubr.bf16.mxu0 0
  %267 = vmatmul.mubr.bf16.gmra.mxu0 %v139
  %v268 = vpop.f32.mrf.mxu0
  %v269 = vadd.f32 %v129, %v268
  %v270 = vpop.f32.mrf.mxu0
  %v271 = vpop.f32.mrf.mxu0
  %v272 = vadd.f32 %v129, %v271
  %v273 = vpop.f32.mrf.mxu0
  %274 = vmatprep.mubr.bf16.mxu0 0
  %275 = vmatmul.mubr.bf16.gmra.mxu0 %v142
  %v276 = vpop.f32.mrf.mxu0
  %v277 = vadd.f32 %v129, %v276
  %v278 = vpop.f32.mrf.mxu0
  %v279 = vpop.f32.mrf.mxu0
  %v280 = vadd.f32 %v129, %v279
  %v281 = vpop.f32.mrf.mxu0
  %282 = vmatprep.mubr.bf16.mxu0 0
  %283 = vmatmul.mubr.bf16.gmra.mxu0 %v145
  %v284 = vpop.f32.mrf.mxu0
  %v285 = vadd.f32 %v129, %v284
  %v286 = vpop.f32.mrf.mxu0
  %v287 = vpop.f32.mrf.mxu0
  %v288 = vadd.f32 %v129, %v287
  %v289 = vpop.f32.mrf.mxu0
  %290 = vmatprep.mubr.bf16.mxu0 0
  %291 = vmatmul.mubr.bf16.gmra.mxu0 %v148
  %v292 = vpop.f32.mrf.mxu0
  %v293 = vadd.f32 %v129, %v292
  %v294 = vpop.f32.mrf.mxu0
  %v295 = vpop.f32.mrf.mxu0
  %v296 = vadd.f32 %v129, %v295
  %v297 = vpop.f32.mrf.mxu0
  %298 = vmatprep.mubr.bf16.mxu0 0
  %299 = vmatmul.mubr.bf16.gmra.mxu0 %v151
  %v300 = vpop.f32.mrf.mxu0
  %v301 = vadd.f32 %v129, %v300
  %v302 = vpop.f32.mrf.mxu0
  %v303 = vpop.f32.mrf.mxu0
  %v304 = vadd.f32 %v129, %v303
  %v305 = vpop.f32.mrf.mxu0
  %306 = vmatprep.mubr.bf16.mxu0 0
  %307 = vmatmul.mubr.bf16.gmra.mxu0 %v154
  %v308 = vpop.f32.mrf.mxu0
  %v309 = vadd.f32 %v129, %v308
  %v310 = vpop.f32.mrf.mxu0
  %v311 = vpop.f32.mrf.mxu0
  %v312 = vadd.f32 %v129, %v311
  %v313 = vpop.f32.mrf.mxu0
  %314 = vmatprep.mubr.bf16.mxu0 0
  %315 = vmatmul.mubr.bf16.gmra.mxu0 %v157
  %v316 = vpop.f32.mrf.mxu0
  %v317 = vadd.f32 %v129, %v316
  %v318 = vpop.f32.mrf.mxu0
  %v319 = vpop.f32.mrf.mxu0
  %v320 = vadd.f32 %v129, %v319
  %v321 = vpop.f32.mrf.mxu0
  %322 = vmatprep.mubr.bf16.mxu0 0
  %323 = vmatmul.mubr.bf16.gmra.mxu0 %v160
  %v324 = vpop.f32.mrf.mxu0
  %v325 = vadd.f32 %v129, %v324
  %v326 = vpop.f32.mrf.mxu0
  %v327 = vpop.f32.mrf.mxu0
  %v328 = vadd.f32 %v129, %v327
  %v329 = vpop.f32.mrf.mxu0
  %330 = vmatprep.mubr.bf16.mxu0 0
  %331 = vmatmul.mubr.bf16.gmra.mxu0 %v163
  %v332 = vpop.f32.mrf.mxu0
  %v333 = vadd.f32 %v129, %v332
  %v334 = vpop.f32.mrf.mxu0
  %v335 = vpop.f32.mrf.mxu0
  %v336 = vadd.f32 %v129, %v335
  %v337 = vpop.f32.mrf.mxu0
  %338 = vmatprep.mubr.bf16.mxu0 0
  %339 = vmatmul.mubr.bf16.gmra.mxu0 %v166
  %v340 = vpop.f32.mrf.mxu0
  %v341 = vadd.f32 %v129, %v340
  %v342 = vpop.f32.mrf.mxu0
  %v343 = vpop.f32.mrf.mxu0
  %v344 = vadd.f32 %v129, %v343
  %v345 = vpop.f32.mrf.mxu0
  %346 = vmatprep.mubr.bf16.mxu0 0
  %347 = vmatmul.mubr.bf16.gmra.mxu0 %v169
  %v348 = vpop.f32.mrf.mxu0
  %v349 = vadd.f32 %v129, %v348
  %v350 = vpop.f32.mrf.mxu0
  %v351 = vpop.f32.mrf.mxu0
  %v352 = vadd.f32 %v129, %v351
  %v353 = vpop.f32.mrf.mxu0
  %354 = vmatprep.mubr.bf16.mxu0 0
  %355 = vmatmul.mubr.bf16.gmra.mxu0 %v172
  %v356 = vpop.f32.mrf.mxu0
  %v357 = vadd.f32 %v129, %v356
  %v358 = vpop.f32.mrf.mxu0
  %v359 = vpop.f32.mrf.mxu0
  %v360 = vadd.f32 %v129, %v359
  %v361 = vpop.f32.mrf.mxu0
  %362 = vmatprep.mubr.bf16.mxu0 0
  %363 = vmatmul.mubr.bf16.gmra.mxu0 %v175
  %v364 = vpop.f32.mrf.mxu0
  %v365 = vadd.f32 %v129, %v364
  %v366 = vpop.f32.mrf.mxu0
  %v367 = vpop.f32.mrf.mxu0
  %v368 = vadd.f32 %v129, %v367
  %v369 = vpop.f32.mrf.mxu0
  %370 = vmatprep.mubr.bf16.mxu0 0
  %371 = vmatmul.mubr.bf16.gmra.mxu0 %v178
  %v372 = vpop.f32.mrf.mxu0
  %v373 = vadd.f32 %v129, %v372
  %v374 = vpop.f32.mrf.mxu0
  %v375 = vpop.f32.mrf.mxu0
  %v376 = vadd.f32 %v129, %v375
  %v377 = vpop.f32.mrf.mxu0
  %378 = vmatprep.mubr.bf16.mxu0 0
  %379 = vmatmul.mubr.bf16.gmra.mxu0 %v181
  %v380 = vpop.f32.mrf.mxu0
  %v381 = vadd.f32 %v129, %v380
  %v382 = vpop.f32.mrf.mxu0
  %v383 = vpop.f32.mrf.mxu0
  %v384 = vadd.f32 %v129, %v383
  %v385 = vpop.f32.mrf.mxu0
  %386 = vmatprep.mubr.bf16.mxu0 0
  %387 = vmatmul.mubr.bf16.gmra.mxu0 %v184
  %v388 = vpop.f32.mrf.mxu0
  %v389 = vadd.f32 %v129, %v388
  %v390 = vpop.f32.mrf.mxu0
  %v391 = vpop.f32.mrf.mxu0
  %v392 = vadd.f32 %v129, %v391
  %v393 = vpop.f32.mrf.mxu0
  %394 = vmatprep.mubr.bf16.mxu0 0
  %395 = vmatmul.mubr.bf16.gmra.mxu0 %v187
  %v396 = vpop.f32.mrf.mxu0
  %v397 = vadd.f32 %v129, %v396
  %v398 = vpop.f32.mrf.mxu0
  %v399 = vpop.f32.mrf.mxu0
  %v400 = vadd.f32 %v129, %v399
  %v401 = vpop.f32.mrf.mxu0
  %402 = vmatprep.mubr.bf16.mxu0 0
  %403 = vmatmul.mubr.bf16.gmra.mxu0 %v190
  %v404 = vpop.f32.mrf.mxu0
  %v405 = vadd.f32 %v129, %v404
  %v406 = vpop.f32.mrf.mxu0
  %v407 = vpop.f32.mrf.mxu0
  %v408 = vadd.f32 %v129, %v407
  %v409 = vpop.f32.mrf.mxu0
  %410 = vmatprep.mubr.bf16.mxu0 0
  %411 = vmatmul.mubr.bf16.gmra.mxu0 %v193
  %v412 = vpop.f32.mrf.mxu0
  %v413 = vadd.f32 %v129, %v412
  %v414 = vpop.f32.mrf.mxu0
  %v415 = vpop.f32.mrf.mxu0
  %v416 = vadd.f32 %v129, %v415
  %v417 = vpop.f32.mrf.mxu0
  %418 = vmatprep.mubr.bf16.mxu0 0
  %419 = vmatmul.mubr.bf16.gmra.mxu0 %v196
  %v420 = vpop.f32.mrf.mxu0
  %v421 = vadd.f32 %v129, %v420
  %v422 = vpop.f32.mrf.mxu0
  %v423 = vpop.f32.mrf.mxu0
  %v424 = vadd.f32 %v129, %v423
  %v425 = vpop.f32.mrf.mxu0
  %426 = vmatprep.mubr.bf16.mxu0 0
  %427 = vmatmul.mubr.bf16.gmra.mxu0 %v199
  %v428 = vpop.f32.mrf.mxu0
  %v429 = vadd.f32 %v129, %v428
  %v430 = vpop.f32.mrf.mxu0
  %v431 = vpop.f32.mrf.mxu0
  %v432 = vadd.f32 %v129, %v431
  %v433 = vpop.f32.mrf.mxu0
  %434 = vmatprep.mubr.bf16.mxu0 0
  %435 = vmatmul.mubr.bf16.gmra.mxu0 %v202
  %v436 = vpop.f32.mrf.mxu0
  %v437 = vadd.f32 %v129, %v436
  %v438 = vpop.f32.mrf.mxu0
  %v439 = vpop.f32.mrf.mxu0
  %v440 = vadd.f32 %v129, %v439
  %v441 = vpop.f32.mrf.mxu0
  %442 = vmatprep.mubr.bf16.mxu0 0
  %443 = vmatmul.mubr.bf16.gmra.mxu0 %v205
  %v444 = vpop.f32.mrf.mxu0
  %v445 = vadd.f32 %v129, %v444
  %v446 = vpop.f32.mrf.mxu0
  %v447 = vpop.f32.mrf.mxu0
  %v448 = vadd.f32 %v129, %v447
  %v449 = vpop.f32.mrf.mxu0
  %450 = vmatprep.mubr.bf16.mxu0 0
  %451 = vmatmul.mubr.bf16.gmra.mxu0 %v208
  %v452 = vpop.f32.mrf.mxu0
  %v453 = vadd.f32 %v129, %v452
  %v454 = vpop.f32.mrf.mxu0
  %v455 = vpop.f32.mrf.mxu0
  %v456 = vadd.f32 %v129, %v455
  %v457 = vpop.f32.mrf.mxu0
  %458 = vmatprep.mubr.bf16.mxu0 0
  %459 = vmatmul.mubr.bf16.gmra.mxu0 %v211
  %v460 = vpop.f32.mrf.mxu0
  %v461 = vadd.f32 %v129, %v460
  %v462 = vpop.f32.mrf.mxu0
  %v463 = vpop.f32.mrf.mxu0
  %v464 = vadd.f32 %v129, %v463
  %v465 = vpop.f32.mrf.mxu0
  %466 = vmatprep.mubr.bf16.mxu0 0
  %467 = vmatmul.mubr.bf16.gmra.mxu0 %v214
  %v468 = vpop.f32.mrf.mxu0
  %v469 = vadd.f32 %v129, %v468
  %v470 = vpop.f32.mrf.mxu0
  %v471 = vpop.f32.mrf.mxu0
  %v472 = vadd.f32 %v129, %v471
  %v473 = vpop.f32.mrf.mxu0
  %474 = vmatprep.mubr.bf16.mxu0 0
  %475 = vmatmul.mubr.bf16.gmra.mxu0 %v217
  %v476 = vpop.f32.mrf.mxu0
  %v477 = vadd.f32 %v129, %v476
  %v478 = vpop.f32.mrf.mxu0
  %v479 = vpop.f32.mrf.mxu0
  %v480 = vadd.f32 %v129, %v479
  %v481 = vpop.f32.mrf.mxu0
  %482 = vmatprep.mubr.bf16.mxu0 0
  %483 = vmatmul.mubr.bf16.gmra.mxu0 %v220
  %v484 = vpop.f32.mrf.mxu0
  %v485 = vadd.f32 %v129, %v484
  %v486 = vpop.f32.mrf.mxu0
  %v487 = vpop.f32.mrf.mxu0
  %v488 = vadd.f32 %v129, %v487
  %v489 = vpop.f32.mrf.mxu0
  %490 = vmatprep.mubr.bf16.mxu0 0
  %491 = vmatmul.mubr.bf16.gmra.mxu0 %v223
  %v492 = vpop.f32.mrf.mxu0
  %v493 = vadd.f32 %v129, %v492
  %v494 = vpop.f32.mrf.mxu0
  %v495 = vpop.f32.mrf.mxu0
  %v496 = vadd.f32 %v129, %v495
  %v497 = vpop.f32.mrf.mxu0
  %498 = vmatprep.mubr.bf16.mxu0 0
  %499 = vmatmul.mubr.bf16.gmra.mxu0 %v226
  %v500 = vpop.f32.mrf.mxu0
  %v501 = vadd.f32 %v129, %v500
  %v502 = vpop.f32.mrf.mxu0
  %v503 = vpop.f32.mrf.mxu0
  %v504 = vadd.f32 %v129, %v503
  %v505 = vpop.f32.mrf.mxu0
  %506 = vmatprep.mubr.bf16.mxu0 0
  %507 = vmatmul.mubr.bf16.gmra.mxu0 %v229
  %v508 = vpop.f32.mrf.mxu0
  %v509 = vadd.f32 %v129, %v508
  %v510 = vpop.f32.mrf.mxu0
  %v511 = vpop.f32.mrf.mxu0
  %v512 = vadd.f32 %v129, %v511
  %v513 = vpop.f32.mrf.mxu0
  %514 = vmatprep.mubr.bf16.mxu0 0
  %515 = vmatmul.mubr.bf16.gmra.mxu0 %v232
  %v516 = vpop.f32.mrf.mxu0
  %v517 = vadd.f32 %v129, %v516
  %v518 = vpop.f32.mrf.mxu0
  %v519 = vpop.f32.mrf.mxu0
  %v520 = vpop.f32.mrf.mxu0
  %521 = vdwg.mxu0
  %v522 = vmax.f32 %v269, 0.0
  %v523 = vmax.f32 %v272, 0.0
  %v524 = vmax.f32 %v277, 0.0
  %v525 = vmax.f32 %v280, 0.0
  %v526 = vmax.f32 %v285, 0.0
  %v527 = vmax.f32 %v288, 0.0
  %v528 = vmax.f32 %v293, 0.0
  %v529 = vmax.f32 %v296, 0.0
  %v530 = vmax.f32 %v301, 0.0
  %v531 = vmax.f32 %v304, 0.0
  %v532 = vmax.f32 %v309, 0.0
  %v533 = vmax.f32 %v312, 0.0
  %v534 = vmax.f32 %v317, 0.0
  %v535 = vmax.f32 %v320, 0.0
  %v536 = vmax.f32 %v325, 0.0
  %v537 = vmax.f32 %v328, 0.0
  %v538 = vmax.f32 %v333, 0.0
  %v539 = vmax.f32 %v336, 0.0
  %v540 = vmax.f32 %v341, 0.0
  %v541 = vmax.f32 %v344, 0.0
  %v542 = vmax.f32 %v349, 0.0
  %v543 = vmax.f32 %v352, 0.0
  %v544 = vmax.f32 %v357, 0.0
  %v545 = vmax.f32 %v360, 0.0
  %v546 = vmax.f32 %v365, 0.0
  %v547 = vmax.f32 %v368, 0.0
  %v548 = vmax.f32 %v373, 0.0
  %v549 = vmax.f32 %v376, 0.0
  %v550 = vmax.f32 %v381, 0.0
  %v551 = vmax.f32 %v384, 0.0
  %v552 = vmax.f32 %v389, 0.0
  %v553 = vmax.f32 %v392, 0.0
  %v554 = vmax.f32 %v397, 0.0
  %v555 = vmax.f32 %v400, 0.0
  %v556 = vmax.f32 %v405, 0.0
  %v557 = vmax.f32 %v408, 0.0
  %v558 = vmax.f32 %v413, 0.0
  %v559 = vmax.f32 %v416, 0.0
  %v560 = vmax.f32 %v421, 0.0
  %v561 = vmax.f32 %v424, 0.0
  %v562 = vmax.f32 %v429, 0.0
  %v563 = vmax.f32 %v432, 0.0
  %v564 = vmax.f32 %v437, 0.0
  %v565 = vmax.f32 %v440, 0.0
  %v566 = vmax.f32 %v445, 0.0
  %v567 = vmax.f32 %v448, 0.0
  %v568 = vmax.f32 %v453, 0.0
  %v569 = vmax.f32 %v456, 0.0
  %v570 = vmax.f32 %v461, 0.0
  %v571 = vmax.f32 %v464, 0.0
  %v572 = vmax.f32 %v469, 0.0
  %v573 = vmax.f32 %v472, 0.0
  %v574 = vmax.f32 %v477, 0.0
  %v575 = vmax.f32 %v480, 0.0
  %v576 = vmax.f32 %v485, 0.0
  %v577 = vmax.f32 %v488, 0.0
  %v578 = vmax.f32 %v493, 0.0
  %v579 = vmax.f32 %v496, 0.0
  %v580 = vmax.f32 %v501, 0.0
  %v581 = vmax.f32 %v504, 0.0
  %v582 = vmax.f32 %v509, 0.0
  %v583 = vmax.f32 %v512, 0.0
  %v584 = vmax.f32 %v517, 0.0
  %v585 = vpack.c.bf16 %v523, %v522
  %v586 = vpack.c.bf16 %v525, %v524
  %v587 = vpack.c.bf16 %v527, %v526
  %v588 = vpack.c.bf16 %v529, %v528
  %v589 = vpack.c.bf16 %v531, %v530
  %v590 = vpack.c.bf16 %v533, %v532
  %v591 = vpack.c.bf16 %v535, %v534
  %v592 = vpack.c.bf16 %v537, %v536
  %v593 = vpack.c.bf16 %v539, %v538
  %v594 = vpack.c.bf16 %v541, %v540
  %v595 = vpack.c.bf16 %v543, %v542
  %v596 = vpack.c.bf16 %v545, %v544
  %v597 = vpack.c.bf16 %v547, %v546
  %v598 = vpack.c.bf16 %v549, %v548
  %v599 = vpack.c.bf16 %v551, %v550
  %v600 = vpack.c.bf16 %v553, %v552
  %v601 = vpack.c.bf16 %v555, %v554
  %v602 = vpack.c.bf16 %v557, %v556
  %v603 = vpack.c.bf16 %v559, %v558
  %v604 = vpack.c.bf16 %v561, %v560
  %v605 = vpack.c.bf16 %v563, %v562
  %v606 = vpack.c.bf16 %v565, %v564
  %v607 = vpack.c.bf16 %v567, %v566
  %v608 = vpack.c.bf16 %v569, %v568
  %v609 = vpack.c.bf16 %v571, %v570
  %v610 = vpack.c.bf16 %v573, %v572
  %v611 = vpack.c.bf16 %v575, %v574
  %v612 = vpack.c.bf16 %v577, %v576
  %v613 = vpack.c.bf16 %v579, %v578
  %v614 = vpack.c.bf16 %v581, %v580
  %v615 = vpack.c.bf16 %v583, %v582
  %v616 = vpack.c.bf16 %v584, %v584
  %v617 = vld [vmem:[%s3] sm:$0xf]
  %v618 = vld [vmem:[%s3 + $0x4] sm:$0xf]
  %v619 = vld [vmem:[%s3 + $0x8] sm:$0xf]
  %v620 = vld [vmem:[%s3 + $0xc] sm:$0x7]
  %v621 = vld [vmem:[%s4] sm:$0x1]
  %v623 = vlaneseq
  %v624 = vshrl.u32 %v623, 7
  %v625 = vsub.s32 0, %v624
  %v626 = vrot.slane %v621, %v625
  %v632 = vunpack.c.l.b16 %v617
  %v633 = vunpack.c.l.b16 %v618
  %v634 = vunpack.c.l.b16 %v619
  %v635 = vunpack.c.l.b16 %v620
  %v636 = vpack.c.b16 %v633, %v632
  %v637 = vpack.c.b16 %v635, %v634
  %vm639 = vcmask 244736
  %v641 = vsel %vm639, %v585, 0
  %v644 = vsel %vm639, %v586, 0
  %v647 = vsel %vm639, %v587, 0
  %v650 = vsel %vm639, %v588, 0
  %v653 = vsel %vm639, %v589, 0
  %v656 = vsel %vm639, %v590, 0
  %v659 = vsel %vm639, %v591, 0
  %v662 = vsel %vm639, %v592, 0
  %v665 = vsel %vm639, %v593, 0
  %v668 = vsel %vm639, %v594, 0
  %v671 = vsel %vm639, %v595, 0
  %v674 = vsel %vm639, %v596, 0
  %v677 = vsel %vm639, %v597, 0
  %v680 = vsel %vm639, %v598, 0
  %v683 = vsel %vm639, %v599, 0
  %v686 = vsel %vm639, %v600, 0
  %v689 = vsel %vm639, %v601, 0
  %v692 = vsel %vm639, %v602, 0
  %v695 = vsel %vm639, %v603, 0
  %v698 = vsel %vm639, %v604, 0
  %v701 = vsel %vm639, %v605, 0
  %v704 = vsel %vm639, %v606, 0
  %v707 = vsel %vm639, %v607, 0
  %v710 = vsel %vm639, %v608, 0
  %v713 = vsel %vm639, %v609, 0
  %v716 = vsel %vm639, %v610, 0
  %v719 = vsel %vm639, %v611, 0
  %v722 = vsel %vm639, %v612, 0
  %v725 = vsel %vm639, %v613, 0
  %v728 = vsel %vm639, %v614, 0
  %v731 = vsel %vm639, %v615, 0
  %v734 = vsel %vm639, %v616, 0
  %vm736 = vcmask 1046528
  %v738 = vsel %vm736, %v637, 0
  %740 = vmatprep.subr.bf16.mxu0 0
  %741 = vmatpush1.bf16.msra.mxu0 0
  %742 = vmatprep.subr.bf16.mxu0 0
  %743 = vmatpush1.bf16.msra.mxu0 0
  %744 = vmatprep.subr.bf16.mxu0 0
  %745 = vmatpush1.bf16.msra.mxu0 0
  %746 = vmatprep.subr.bf16.mxu0 0
  %747 = vmatpush1.bf16.msra.mxu0 0
  %748 = vmatprep.subr.bf16.mxu0 0
  %749 = vmatpush1.bf16.msra.mxu0 0
  %750 = vmatprep.subr.bf16.mxu0 0
  %751 = vmatpush1.bf16.msra.mxu0 0
  %752 = vmatprep.subr.bf16.mxu0 0
  %753 = vmatpush1.bf16.msra.mxu0 %v738
  %754 = vmatprep.subr.bf16.mxu0 0
  %755 = vmatpush1.bf16.msra.mxu0 %v636
  %756 = vmatprep.subr.bf16.mxu0 0
  %757 = vmatpush2.bf16.msra.mxu0 0
  %758 = vmatprep.subr.bf16.mxu0 0
  %759 = vmatpush2.bf16.msra.mxu0 0
  %760 = vmatprep.subr.bf16.mxu0 0
  %761 = vmatpush2.bf16.msra.mxu0 0
  %762 = vmatprep.subr.bf16.mxu0 0
  %763 = vmatpush2.bf16.msra.mxu0 0
  %764 = vmatprep.subr.bf16.mxu0 0
  %765 = vmatpush2.bf16.msra.mxu0 0
  %766 = vmatprep.subr.bf16.mxu0 0
  %767 = vmatpush2.bf16.msra.mxu0 0
  %768 = vmatprep.subr.bf16.mxu0 0
  %769 = vmatpush2.bf16.msra.mxu0 0
  %770 = vmatprep.subr.bf16.mxu0 0
  %771 = vmatpush2.bf16.msra.mxu0 0
  %772 = vmatprep.mubr.bf16.mxu0 0
  %773 = vmatmul.mubr.bf16.gmra.mxu0 %v641
  %v774 = vpop.f32.mrf.mxu0
  %v775 = vadd.f32 %v626, %v774
  %v776 = vpop.f32.mrf.mxu0
  %v777 = vpop.f32.mrf.mxu0
  %v778 = vadd.f32 %v626, %v777
  %v779 = vpop.f32.mrf.mxu0
  %780 = vmatprep.mubr.bf16.mxu0 0
  %781 = vmatmul.mubr.bf16.gmra.mxu0 %v644
  %v782 = vpop.f32.mrf.mxu0
  %v783 = vadd.f32 %v626, %v782
  %v784 = vpop.f32.mrf.mxu0
  %v785 = vpop.f32.mrf.mxu0
  %v786 = vadd.f32 %v626, %v785
  %v787 = vpop.f32.mrf.mxu0
  %788 = vmatprep.mubr.bf16.mxu0 0
  %789 = vmatmul.mubr.bf16.gmra.mxu0 %v647
  %v790 = vpop.f32.mrf.mxu0
  %v791 = vadd.f32 %v626, %v790
  %v792 = vpop.f32.mrf.mxu0
  %v793 = vpop.f32.mrf.mxu0
  %v794 = vadd.f32 %v626, %v793
  %v795 = vpop.f32.mrf.mxu0
  %796 = vmatprep.mubr.bf16.mxu0 0
  %797 = vmatmul.mubr.bf16.gmra.mxu0 %v650
  %v798 = vpop.f32.mrf.mxu0
  %v799 = vadd.f32 %v626, %v798
  %v800 = vpop.f32.mrf.mxu0
  %v801 = vpop.f32.mrf.mxu0
  %v802 = vadd.f32 %v626, %v801
  %v803 = vpop.f32.mrf.mxu0
  %804 = vmatprep.mubr.bf16.mxu0 0
  %805 = vmatmul.mubr.bf16.gmra.mxu0 %v653
  %v806 = vpop.f32.mrf.mxu0
  %v807 = vadd.f32 %v626, %v806
  %v808 = vpop.f32.mrf.mxu0
  %v809 = vpop.f32.mrf.mxu0
  %v810 = vadd.f32 %v626, %v809
  %v811 = vpop.f32.mrf.mxu0
  %812 = vmatprep.mubr.bf16.mxu0 0
  %813 = vmatmul.mubr.bf16.gmra.mxu0 %v656
  %v814 = vpop.f32.mrf.mxu0
  %v815 = vadd.f32 %v626, %v814
  %v816 = vpop.f32.mrf.mxu0
  %v817 = vpop.f32.mrf.mxu0
  %v818 = vadd.f32 %v626, %v817
  %v819 = vpop.f32.mrf.mxu0
  %820 = vmatprep.mubr.bf16.mxu0 0
  %821 = vmatmul.mubr.bf16.gmra.mxu0 %v659
  %v822 = vpop.f32.mrf.mxu0
  %v823 = vadd.f32 %v626, %v822
  %v824 = vpop.f32.mrf.mxu0
  %v825 = vpop.f32.mrf.mxu0
  %v826 = vadd.f32 %v626, %v825
  %v827 = vpop.f32.mrf.mxu0
  %828 = vmatprep.mubr.bf16.mxu0 0
  %829 = vmatmul.mubr.bf16.gmra.mxu0 %v662
  %v830 = vpop.f32.mrf.mxu0
  %v831 = vadd.f32 %v626, %v830
  %v832 = vpop.f32.mrf.mxu0
  %v833 = vpop.f32.mrf.mxu0
  %v834 = vadd.f32 %v626, %v833
  %v835 = vpop.f32.mrf.mxu0
  %836 = vmatprep.mubr.bf16.mxu0 0
  %837 = vmatmul.mubr.bf16.gmra.mxu0 %v665
  %v838 = vpop.f32.mrf.mxu0
  %v839 = vadd.f32 %v626, %v838
  %v840 = vpop.f32.mrf.mxu0
  %v841 = vpop.f32.mrf.mxu0
  %v842 = vadd.f32 %v626, %v841
  %v843 = vpop.f32.mrf.mxu0
  %844 = vmatprep.mubr.bf16.mxu0 0
  %845 = vmatmul.mubr.bf16.gmra.mxu0 %v668
  %v846 = vpop.f32.mrf.mxu0
  %v847 = vadd.f32 %v626, %v846
  %v848 = vpop.f32.mrf.mxu0
  %v849 = vpop.f32.mrf.mxu0
  %v850 = vadd.f32 %v626, %v849
  %v851 = vpop.f32.mrf.mxu0
  %852 = vmatprep.mubr.bf16.mxu0 0
  %853 = vmatmul.mubr.bf16.gmra.mxu0 %v671
  %v854 = vpop.f32.mrf.mxu0
  %v855 = vadd.f32 %v626, %v854
  %v856 = vpop.f32.mrf.mxu0
  %v857 = vpop.f32.mrf.mxu0
  %v858 = vadd.f32 %v626, %v857
  %v859 = vpop.f32.mrf.mxu0
  %860 = vmatprep.mubr.bf16.mxu0 0
  %861 = vmatmul.mubr.bf16.gmra.mxu0 %v674
  %v862 = vpop.f32.mrf.mxu0
  %v863 = vadd.f32 %v626, %v862
  %v864 = vpop.f32.mrf.mxu0
  %v865 = vpop.f32.mrf.mxu0
  %v866 = vadd.f32 %v626, %v865
  %v867 = vpop.f32.mrf.mxu0
  %868 = vmatprep.mubr.bf16.mxu0 0
  %869 = vmatmul.mubr.bf16.gmra.mxu0 %v677
  %v870 = vpop.f32.mrf.mxu0
  %v871 = vadd.f32 %v626, %v870
  %v872 = vpop.f32.mrf.mxu0
  %v873 = vpop.f32.mrf.mxu0
  %v874 = vadd.f32 %v626, %v873
  %v875 = vpop.f32.mrf.mxu0
  %876 = vmatprep.mubr.bf16.mxu0 0
  %877 = vmatmul.mubr.bf16.gmra.mxu0 %v680
  %v878 = vpop.f32.mrf.mxu0
  %v879 = vadd.f32 %v626, %v878
  %v880 = vpop.f32.mrf.mxu0
  %v881 = vpop.f32.mrf.mxu0
  %v882 = vadd.f32 %v626, %v881
  %v883 = vpop.f32.mrf.mxu0
  %884 = vmatprep.mubr.bf16.mxu0 0
  %885 = vmatmul.mubr.bf16.gmra.mxu0 %v683
  %v886 = vpop.f32.mrf.mxu0
  %v887 = vadd.f32 %v626, %v886
  %v888 = vpop.f32.mrf.mxu0
  %v889 = vpop.f32.mrf.mxu0
  %v890 = vadd.f32 %v626, %v889
  %v891 = vpop.f32.mrf.mxu0
  %892 = vmatprep.mubr.bf16.mxu0 0
  %893 = vmatmul.mubr.bf16.gmra.mxu0 %v686
  %v894 = vpop.f32.mrf.mxu0
  %v895 = vadd.f32 %v626, %v894
  %v896 = vpop.f32.mrf.mxu0
  %v897 = vpop.f32.mrf.mxu0
  %v898 = vadd.f32 %v626, %v897
  %v899 = vpop.f32.mrf.mxu0
  %900 = vmatprep.mubr.bf16.mxu0 0
  %901 = vmatmul.mubr.bf16.gmra.mxu0 %v689
  %v902 = vpop.f32.mrf.mxu0
  %v903 = vadd.f32 %v626, %v902
  %v904 = vpop.f32.mrf.mxu0
  %v905 = vpop.f32.mrf.mxu0
  %v906 = vadd.f32 %v626, %v905
  %v907 = vpop.f32.mrf.mxu0
  %908 = vmatprep.mubr.bf16.mxu0 0
  %909 = vmatmul.mubr.bf16.gmra.mxu0 %v692
  %v910 = vpop.f32.mrf.mxu0
  %v911 = vadd.f32 %v626, %v910
  %v912 = vpop.f32.mrf.mxu0
  %v913 = vpop.f32.mrf.mxu0
  %v914 = vadd.f32 %v626, %v913
  %v915 = vpop.f32.mrf.mxu0
  %916 = vmatprep.mubr.bf16.mxu0 0
  %917 = vmatmul.mubr.bf16.gmra.mxu0 %v695
  %v918 = vpop.f32.mrf.mxu0
  %v919 = vadd.f32 %v626, %v918
  %v920 = vpop.f32.mrf.mxu0
  %v921 = vpop.f32.mrf.mxu0
  %v922 = vadd.f32 %v626, %v921
  %v923 = vpop.f32.mrf.mxu0
  %924 = vmatprep.mubr.bf16.mxu0 0
  %925 = vmatmul.mubr.bf16.gmra.mxu0 %v698
  %v926 = vpop.f32.mrf.mxu0
  %v927 = vadd.f32 %v626, %v926
  %v928 = vpop.f32.mrf.mxu0
  %v929 = vpop.f32.mrf.mxu0
  %v930 = vadd.f32 %v626, %v929
  %v931 = vpop.f32.mrf.mxu0
  %932 = vmatprep.mubr.bf16.mxu0 0
  %933 = vmatmul.mubr.bf16.gmra.mxu0 %v701
  %v934 = vpop.f32.mrf.mxu0
  %v935 = vadd.f32 %v626, %v934
  %v936 = vpop.f32.mrf.mxu0
  %v937 = vpop.f32.mrf.mxu0
  %v938 = vadd.f32 %v626, %v937
  %v939 = vpop.f32.mrf.mxu0
  %940 = vmatprep.mubr.bf16.mxu0 0
  %941 = vmatmul.mubr.bf16.gmra.mxu0 %v704
  %v942 = vpop.f32.mrf.mxu0
  %v943 = vadd.f32 %v626, %v942
  %v944 = vpop.f32.mrf.mxu0
  %v945 = vpop.f32.mrf.mxu0
  %v946 = vadd.f32 %v626, %v945
  %v947 = vpop.f32.mrf.mxu0
  %948 = vmatprep.mubr.bf16.mxu0 0
  %949 = vmatmul.mubr.bf16.gmra.mxu0 %v707
  %v950 = vpop.f32.mrf.mxu0
  %v951 = vadd.f32 %v626, %v950
  %v952 = vpop.f32.mrf.mxu0
  %v953 = vpop.f32.mrf.mxu0
  %v954 = vadd.f32 %v626, %v953
  %v955 = vpop.f32.mrf.mxu0
  %956 = vmatprep.mubr.bf16.mxu0 0
  %957 = vmatmul.mubr.bf16.gmra.mxu0 %v710
  %v958 = vpop.f32.mrf.mxu0
  %v959 = vadd.f32 %v626, %v958
  %v960 = vpop.f32.mrf.mxu0
  %v961 = vpop.f32.mrf.mxu0
  %v962 = vadd.f32 %v626, %v961
  %v963 = vpop.f32.mrf.mxu0
  %964 = vmatprep.mubr.bf16.mxu0 0
  %965 = vmatmul.mubr.bf16.gmra.mxu0 %v713
  %v966 = vpop.f32.mrf.mxu0
  %v967 = vadd.f32 %v626, %v966
  %v968 = vpop.f32.mrf.mxu0
  %v969 = vpop.f32.mrf.mxu0
  %v970 = vadd.f32 %v626, %v969
  %v971 = vpop.f32.mrf.mxu0
  %972 = vmatprep.mubr.bf16.mxu0 0
  %973 = vmatmul.mubr.bf16.gmra.mxu0 %v716
  %v974 = vpop.f32.mrf.mxu0
  %v975 = vadd.f32 %v626, %v974
  %v976 = vpop.f32.mrf.mxu0
  %v977 = vpop.f32.mrf.mxu0
  %v978 = vadd.f32 %v626, %v977
  %v979 = vpop.f32.mrf.mxu0
  %980 = vmatprep.mubr.bf16.mxu0 0
  %981 = vmatmul.mubr.bf16.gmra.mxu0 %v719
  %v982 = vpop.f32.mrf.mxu0
  %v983 = vadd.f32 %v626, %v982
  %v984 = vpop.f32.mrf.mxu0
  %v985 = vpop.f32.mrf.mxu0
  %v986 = vadd.f32 %v626, %v985
  %v987 = vpop.f32.mrf.mxu0
  %988 = vmatprep.mubr.bf16.mxu0 0
  %989 = vmatmul.mubr.bf16.gmra.mxu0 %v722
  %v990 = vpop.f32.mrf.mxu0
  %v991 = vadd.f32 %v626, %v990
  %v992 = vpop.f32.mrf.mxu0
  %v993 = vpop.f32.mrf.mxu0
  %v994 = vadd.f32 %v626, %v993
  %v995 = vpop.f32.mrf.mxu0
  %996 = vmatprep.mubr.bf16.mxu0 0
  %997 = vmatmul.mubr.bf16.gmra.mxu0 %v725
  %v998 = vpop.f32.mrf.mxu0
  %v999 = vadd.f32 %v626, %v998
  %v1000 = vpop.f32.mrf.mxu0
  %v1001 = vpop.f32.mrf.mxu0
  %v1002 = vadd.f32 %v626, %v1001
  %v1003 = vpop.f32.mrf.mxu0
  %1004 = vmatprep.mubr.bf16.mxu0 0
  %1005 = vmatmul.mubr.bf16.gmra.mxu0 %v728
  %v1006 = vpop.f32.mrf.mxu0
  %v1007 = vadd.f32 %v626, %v1006
  %v1008 = vpop.f32.mrf.mxu0
  %v1009 = vpop.f32.mrf.mxu0
  %v1010 = vadd.f32 %v626, %v1009
  %v1011 = vpop.f32.mrf.mxu0
  %1012 = vmatprep.mubr.bf16.mxu0 0
  %1013 = vmatmul.mubr.bf16.gmra.mxu0 %v731
  %v1014 = vpop.f32.mrf.mxu0
  %v1015 = vadd.f32 %v626, %v1014
  %v1016 = vpop.f32.mrf.mxu0
  %v1017 = vpop.f32.mrf.mxu0
  %v1018 = vadd.f32 %v626, %v1017
  %v1019 = vpop.f32.mrf.mxu0
  %1020 = vmatprep.mubr.bf16.mxu0 0
  %1021 = vmatmul.mubr.bf16.gmra.mxu0 %v734
  %v1022 = vpop.f32.mrf.mxu0
  %v1023 = vadd.f32 %v626, %v1022
  %v1024 = vpop.f32.mrf.mxu0
  %v1025 = vpop.f32.mrf.mxu0
  %v1026 = vpop.f32.mrf.mxu0
  %1027 = vdwg.mxu0
  %v1028 = vmax.f32 %v775, 0.0
  %v1029 = vmax.f32 %v778, 0.0
  %v1030 = vmax.f32 %v783, 0.0
  %v1031 = vmax.f32 %v786, 0.0
  %v1032 = vmax.f32 %v791, 0.0
  %v1033 = vmax.f32 %v794, 0.0
  %v1034 = vmax.f32 %v799, 0.0
  %v1035 = vmax.f32 %v802, 0.0
  %v1036 = vmax.f32 %v807, 0.0
  %v1037 = vmax.f32 %v810, 0.0
  %v1038 = vmax.f32 %v815, 0.0
  %v1039 = vmax.f32 %v818, 0.0
  %v1040 = vmax.f32 %v823, 0.0
  %v1041 = vmax.f32 %v826, 0.0
  %v1042 = vmax.f32 %v831, 0.0
  %v1043 = vmax.f32 %v834, 0.0
  %v1044 = vmax.f32 %v839, 0.0
  %v1045 = vmax.f32 %v842, 0.0
  %v1046 = vmax.f32 %v847, 0.0
  %v1047 = vmax.f32 %v850, 0.0
  %v1048 = vmax.f32 %v855, 0.0
  %v1049 = vmax.f32 %v858, 0.0
  %v1050 = vmax.f32 %v863, 0.0
  %v1051 = vmax.f32 %v866, 0.0
  %v1052 = vmax.f32 %v871, 0.0
  %v1053 = vmax.f32 %v874, 0.0
  %v1054 = vmax.f32 %v879, 0.0
  %v1055 = vmax.f32 %v882, 0.0
  %v1056 = vmax.f32 %v887, 0.0
  %v1057 = vmax.f32 %v890, 0.0
  %v1058 = vmax.f32 %v895, 0.0
  %v1059 = vmax.f32 %v898, 0.0
  %v1060 = vmax.f32 %v903, 0.0
  %v1061 = vmax.f32 %v906, 0.0
  %v1062 = vmax.f32 %v911, 0.0
  %v1063 = vmax.f32 %v914, 0.0
  %v1064 = vmax.f32 %v919, 0.0
  %v1065 = vmax.f32 %v922, 0.0
  %v1066 = vmax.f32 %v927, 0.0
  %v1067 = vmax.f32 %v930, 0.0
  %v1068 = vmax.f32 %v935, 0.0
  %v1069 = vmax.f32 %v938, 0.0
  %v1070 = vmax.f32 %v943, 0.0
  %v1071 = vmax.f32 %v946, 0.0
  %v1072 = vmax.f32 %v951, 0.0
  %v1073 = vmax.f32 %v954, 0.0
  %v1074 = vmax.f32 %v959, 0.0
  %v1075 = vmax.f32 %v962, 0.0
  %v1076 = vmax.f32 %v967, 0.0
  %v1077 = vmax.f32 %v970, 0.0
  %v1078 = vmax.f32 %v975, 0.0
  %v1079 = vmax.f32 %v978, 0.0
  %v1080 = vmax.f32 %v983, 0.0
  %v1081 = vmax.f32 %v986, 0.0
  %v1082 = vmax.f32 %v991, 0.0
  %v1083 = vmax.f32 %v994, 0.0
  %v1084 = vmax.f32 %v999, 0.0
  %v1085 = vmax.f32 %v1002, 0.0
  %v1086 = vmax.f32 %v1007, 0.0
  %v1087 = vmax.f32 %v1010, 0.0
  %v1088 = vmax.f32 %v1015, 0.0
  %v1089 = vmax.f32 %v1018, 0.0
  %v1090 = vmax.f32 %v1023, 0.0
  %v1091 = vpack.c.bf16 %v1029, %v1028
  %v1092 = vpack.c.bf16 %v1031, %v1030
  %v1093 = vpack.c.bf16 %v1033, %v1032
  %v1094 = vpack.c.bf16 %v1035, %v1034
  %v1095 = vpack.c.bf16 %v1037, %v1036
  %v1096 = vpack.c.bf16 %v1039, %v1038
  %v1097 = vpack.c.bf16 %v1041, %v1040
  %v1098 = vpack.c.bf16 %v1043, %v1042
  %v1099 = vpack.c.bf16 %v1045, %v1044
  %v1100 = vpack.c.bf16 %v1047, %v1046
  %v1101 = vpack.c.bf16 %v1049, %v1048
  %v1102 = vpack.c.bf16 %v1051, %v1050
  %v1103 = vpack.c.bf16 %v1053, %v1052
  %v1104 = vpack.c.bf16 %v1055, %v1054
  %v1105 = vpack.c.bf16 %v1057, %v1056
  %v1106 = vpack.c.bf16 %v1059, %v1058
  %v1107 = vpack.c.bf16 %v1061, %v1060
  %v1108 = vpack.c.bf16 %v1063, %v1062
  %v1109 = vpack.c.bf16 %v1065, %v1064
  %v1110 = vpack.c.bf16 %v1067, %v1066
  %v1111 = vpack.c.bf16 %v1069, %v1068
  %v1112 = vpack.c.bf16 %v1071, %v1070
  %v1113 = vpack.c.bf16 %v1073, %v1072
  %v1114 = vpack.c.bf16 %v1075, %v1074
  %v1115 = vpack.c.bf16 %v1077, %v1076
  %v1116 = vpack.c.bf16 %v1079, %v1078
  %v1117 = vpack.c.bf16 %v1081, %v1080
  %v1118 = vpack.c.bf16 %v1083, %v1082
  %v1119 = vpack.c.bf16 %v1085, %v1084
  %v1120 = vpack.c.bf16 %v1087, %v1086
  %v1121 = vpack.c.bf16 %v1089, %v1088
  %v1122 = vpack.c.bf16 %v1090, %v1090
  %v1123 = vld [vmem:[%s5] sm:$0xf]
  %v1124 = vld [vmem:[%s5 + $0x4] sm:$0xf]
  %v1125 = vld [vmem:[%s5 + $0x8] sm:$0x3]
  %v1126 = vld [vmem:[%s6] sm:$0x1]
  %v1128 = vlaneseq
  %v1129 = vshrl.u32 %v1128, 7
  %v1130 = vsub.s32 0, %v1129
  %v1131 = vrot.slane %v1126, %v1130
  %v1136 = vunpack.c.l.b16 %v1123
  %v1137 = vunpack.c.l.b16 %v1124
  %v1138 = vunpack.c.l.b16 %v1125
  %v1139 = vpack.c.b16 %v1137, %v1136
  %v1140 = vpack.c.b16 %v1138, %v1138
  %vm1142 = vcmask 162816
  %v1144 = vsel %vm1142, %v1091, 0
  %v1147 = vsel %vm1142, %v1092, 0
  %v1150 = vsel %vm1142, %v1093, 0
  %v1153 = vsel %vm1142, %v1094, 0
  %v1156 = vsel %vm1142, %v1095, 0
  %v1159 = vsel %vm1142, %v1096, 0
  %v1162 = vsel %vm1142, %v1097, 0
  %v1165 = vsel %vm1142, %v1098, 0
  %v1168 = vsel %vm1142, %v1099, 0
  %v1171 = vsel %vm1142, %v1100, 0
  %v1174 = vsel %vm1142, %v1101, 0
  %v1177 = vsel %vm1142, %v1102, 0
  %v1180 = vsel %vm1142, %v1103, 0
  %v1183 = vsel %vm1142, %v1104, 0
  %v1186 = vsel %vm1142, %v1105, 0
  %v1189 = vsel %vm1142, %v1106, 0
  %v1192 = vsel %vm1142, %v1107, 0
  %v1195 = vsel %vm1142, %v1108, 0
  %v1198 = vsel %vm1142, %v1109, 0
  %v1201 = vsel %vm1142, %v1110, 0
  %v1204 = vsel %vm1142, %v1111, 0
  %v1207 = vsel %vm1142, %v1112, 0
  %v1210 = vsel %vm1142, %v1113, 0
  %v1213 = vsel %vm1142, %v1114, 0
  %v1216 = vsel %vm1142, %v1115, 0
  %v1219 = vsel %vm1142, %v1116, 0
  %v1222 = vsel %vm1142, %v1117, 0
  %v1225 = vsel %vm1142, %v1118, 0
  %v1228 = vsel %vm1142, %v1119, 0
  %v1231 = vsel %vm1142, %v1120, 0
  %v1234 = vsel %vm1142, %v1121, 0
  %v1237 = vsel %vm1142, %v1122, 0
  %vm1239 = vcmask 1041408
  %v1241 = vsel %vm1239, %v1140, 0
  %1243 = vmatprep.subr.bf16.mxu0 0
  %1244 = vmatpush1.bf16.msra.mxu0 0
  %1245 = vmatprep.subr.bf16.mxu0 0
  %1246 = vmatpush1.bf16.msra.mxu0 0
  %1247 = vmatprep.subr.bf16.mxu0 0
  %1248 = vmatpush1.bf16.msra.mxu0 0
  %1249 = vmatprep.subr.bf16.mxu0 0
  %1250 = vmatpush1.bf16.msra.mxu0 0
  %1251 = vmatprep.subr.bf16.mxu0 0
  %1252 = vmatpush1.bf16.msra.mxu0 0
  %1253 = vmatprep.subr.bf16.mxu0 0
  %1254 = vmatpush1.bf16.msra.mxu0 0
  %1255 = vmatprep.subr.bf16.mxu0 0
  %1256 = vmatpush1.bf16.msra.mxu0 %v1241
  %1257 = vmatprep.subr.bf16.mxu0 0
  %1258 = vmatpush1.bf16.msra.mxu0 %v1139
  %1259 = vmatprep.subr.bf16.mxu0 0
  %1260 = vmatpush2.bf16.msra.mxu0 0
  %1261 = vmatprep.subr.bf16.mxu0 0
  %1262 = vmatpush2.bf16.msra.mxu0 0
  %1263 = vmatprep.subr.bf16.mxu0 0
  %1264 = vmatpush2.bf16.msra.mxu0 0
  %1265 = vmatprep.subr.bf16.mxu0 0
  %1266 = vmatpush2.bf16.msra.mxu0 0
  %1267 = vmatprep.subr.bf16.mxu0 0
  %1268 = vmatpush2.bf16.msra.mxu0 0
  %1269 = vmatprep.subr.bf16.mxu0 0
  %1270 = vmatpush2.bf16.msra.mxu0 0
  %1271 = vmatprep.subr.bf16.mxu0 0
  %1272 = vmatpush2.bf16.msra.mxu0 0
  %1273 = vmatprep.subr.bf16.mxu0 0
  %1274 = vmatpush2.bf16.msra.mxu0 0
  %1275 = vmatprep.mubr.bf16.mxu0 0
  %1276 = vmatmul.mubr.bf16.gmra.mxu0 %v1144
  %v1277 = vpop.f32.mrf.mxu0
  %v1278 = vadd.f32 %v1131, %v1277
  %v1279 = vpop.f32.mrf.mxu0
  %v1280 = vpop.f32.mrf.mxu0
  %v1281 = vadd.f32 %v1131, %v1280
  %v1282 = vpop.f32.mrf.mxu0
  %1283 = vmatprep.mubr.bf16.mxu0 0
  %1284 = vmatmul.mubr.bf16.gmra.mxu0 %v1147
  %v1285 = vpop.f32.mrf.mxu0
  %v1286 = vadd.f32 %v1131, %v1285
  %v1287 = vpop.f32.mrf.mxu0
  %v1288 = vpop.f32.mrf.mxu0
  %v1289 = vadd.f32 %v1131, %v1288
  %v1290 = vpop.f32.mrf.mxu0
  %1291 = vmatprep.mubr.bf16.mxu0 0
  %1292 = vmatmul.mubr.bf16.gmra.mxu0 %v1150
  %v1293 = vpop.f32.mrf.mxu0
  %v1294 = vadd.f32 %v1131, %v1293
  %v1295 = vpop.f32.mrf.mxu0
  %v1296 = vpop.f32.mrf.mxu0
  %v1297 = vadd.f32 %v1131, %v1296
  %v1298 = vpop.f32.mrf.mxu0
  %1299 = vmatprep.mubr.bf16.mxu0 0
  %1300 = vmatmul.mubr.bf16.gmra.mxu0 %v1153
  %v1301 = vpop.f32.mrf.mxu0
  %v1302 = vadd.f32 %v1131, %v1301
  %v1303 = vpop.f32.mrf.mxu0
  %v1304 = vpop.f32.mrf.mxu0
  %v1305 = vadd.f32 %v1131, %v1304
  %v1306 = vpop.f32.mrf.mxu0
  %1307 = vmatprep.mubr.bf16.mxu0 0
  %1308 = vmatmul.mubr.bf16.gmra.mxu0 %v1156
  %v1309 = vpop.f32.mrf.mxu0
  %v1310 = vadd.f32 %v1131, %v1309
  %v1311 = vpop.f32.mrf.mxu0
  %v1312 = vpop.f32.mrf.mxu0
  %v1313 = vadd.f32 %v1131, %v1312
  %v1314 = vpop.f32.mrf.mxu0
  %1315 = vmatprep.mubr.bf16.mxu0 0
  %1316 = vmatmul.mubr.bf16.gmra.mxu0 %v1159
  %v1317 = vpop.f32.mrf.mxu0
  %v1318 = vadd.f32 %v1131, %v1317
  %v1319 = vpop.f32.mrf.mxu0
  %v1320 = vpop.f32.mrf.mxu0
  %v1321 = vadd.f32 %v1131, %v1320
  %v1322 = vpop.f32.mrf.mxu0
  %1323 = vmatprep.mubr.bf16.mxu0 0
  %1324 = vmatmul.mubr.bf16.gmra.mxu0 %v1162
  %v1325 = vpop.f32.mrf.mxu0
  %v1326 = vadd.f32 %v1131, %v1325
  %v1327 = vpop.f32.mrf.mxu0
  %v1328 = vpop.f32.mrf.mxu0
  %v1329 = vadd.f32 %v1131, %v1328
  %v1330 = vpop.f32.mrf.mxu0
  %1331 = vmatprep.mubr.bf16.mxu0 0
  %1332 = vmatmul.mubr.bf16.gmra.mxu0 %v1165
  %v1333 = vpop.f32.mrf.mxu0
  %v1334 = vadd.f32 %v1131, %v1333
  %v1335 = vpop.f32.mrf.mxu0
  %v1336 = vpop.f32.mrf.mxu0
  %v1337 = vadd.f32 %v1131, %v1336
  %v1338 = vpop.f32.mrf.mxu0
  %1339 = vmatprep.mubr.bf16.mxu0 0
  %1340 = vmatmul.mubr.bf16.gmra.mxu0 %v1168
  %v1341 = vpop.f32.mrf.mxu0
  %v1342 = vadd.f32 %v1131, %v1341
  %v1343 = vpop.f32.mrf.mxu0
  %v1344 = vpop.f32.mrf.mxu0
  %v1345 = vadd.f32 %v1131, %v1344
  %v1346 = vpop.f32.mrf.mxu0
  %1347 = vmatprep.mubr.bf16.mxu0 0
  %1348 = vmatmul.mubr.bf16.gmra.mxu0 %v1171
  %v1349 = vpop.f32.mrf.mxu0
  %v1350 = vadd.f32 %v1131, %v1349
  %v1351 = vpop.f32.mrf.mxu0
  %v1352 = vpop.f32.mrf.mxu0
  %v1353 = vadd.f32 %v1131, %v1352
  %v1354 = vpop.f32.mrf.mxu0
  %1355 = vmatprep.mubr.bf16.mxu0 0
  %1356 = vmatmul.mubr.bf16.gmra.mxu0 %v1174
  %v1357 = vpop.f32.mrf.mxu0
  %v1358 = vadd.f32 %v1131, %v1357
  %v1359 = vpop.f32.mrf.mxu0
  %v1360 = vpop.f32.mrf.mxu0
  %v1361 = vadd.f32 %v1131, %v1360
  %v1362 = vpop.f32.mrf.mxu0
  %1363 = vmatprep.mubr.bf16.mxu0 0
  %1364 = vmatmul.mubr.bf16.gmra.mxu0 %v1177
  %v1365 = vpop.f32.mrf.mxu0
  %v1366 = vadd.f32 %v1131, %v1365
  %v1367 = vpop.f32.mrf.mxu0
  %v1368 = vpop.f32.mrf.mxu0
  %v1369 = vadd.f32 %v1131, %v1368
  %v1370 = vpop.f32.mrf.mxu0
  %1371 = vmatprep.mubr.bf16.mxu0 0
  %1372 = vmatmul.mubr.bf16.gmra.mxu0 %v1180
  %v1373 = vpop.f32.mrf.mxu0
  %v1374 = vadd.f32 %v1131, %v1373
  %v1375 = vpop.f32.mrf.mxu0
  %v1376 = vpop.f32.mrf.mxu0
  %v1377 = vadd.f32 %v1131, %v1376
  %v1378 = vpop.f32.mrf.mxu0
  %1379 = vmatprep.mubr.bf16.mxu0 0
  %1380 = vmatmul.mubr.bf16.gmra.mxu0 %v1183
  %v1381 = vpop.f32.mrf.mxu0
  %v1382 = vadd.f32 %v1131, %v1381
  %v1383 = vpop.f32.mrf.mxu0
  %v1384 = vpop.f32.mrf.mxu0
  %v1385 = vadd.f32 %v1131, %v1384
  %v1386 = vpop.f32.mrf.mxu0
  %1387 = vmatprep.mubr.bf16.mxu0 0
  %1388 = vmatmul.mubr.bf16.gmra.mxu0 %v1186
  %v1389 = vpop.f32.mrf.mxu0
  %v1390 = vadd.f32 %v1131, %v1389
  %v1391 = vpop.f32.mrf.mxu0
  %v1392 = vpop.f32.mrf.mxu0
  %v1393 = vadd.f32 %v1131, %v1392
  %v1394 = vpop.f32.mrf.mxu0
  %1395 = vmatprep.mubr.bf16.mxu0 0
  %1396 = vmatmul.mubr.bf16.gmra.mxu0 %v1189
  %v1397 = vpop.f32.mrf.mxu0
  %v1398 = vadd.f32 %v1131, %v1397
  %v1399 = vpop.f32.mrf.mxu0
  %v1400 = vpop.f32.mrf.mxu0
  %v1401 = vadd.f32 %v1131, %v1400
  %v1402 = vpop.f32.mrf.mxu0
  %1403 = vmatprep.mubr.bf16.mxu0 0
  %1404 = vmatmul.mubr.bf16.gmra.mxu0 %v1192
  %v1405 = vpop.f32.mrf.mxu0
  %v1406 = vadd.f32 %v1131, %v1405
  %v1407 = vpop.f32.mrf.mxu0
  %v1408 = vpop.f32.mrf.mxu0
  %v1409 = vadd.f32 %v1131, %v1408
  %v1410 = vpop.f32.mrf.mxu0
  %1411 = vmatprep.mubr.bf16.mxu0 0
  %1412 = vmatmul.mubr.bf16.gmra.mxu0 %v1195
  %v1413 = vpop.f32.mrf.mxu0
  %v1414 = vadd.f32 %v1131, %v1413
  %v1415 = vpop.f32.mrf.mxu0
  %v1416 = vpop.f32.mrf.mxu0
  %v1417 = vadd.f32 %v1131, %v1416
  %v1418 = vpop.f32.mrf.mxu0
  %1419 = vmatprep.mubr.bf16.mxu0 0
  %1420 = vmatmul.mubr.bf16.gmra.mxu0 %v1198
  %v1421 = vpop.f32.mrf.mxu0
  %v1422 = vadd.f32 %v1131, %v1421
  %v1423 = vpop.f32.mrf.mxu0
  %v1424 = vpop.f32.mrf.mxu0
  %v1425 = vadd.f32 %v1131, %v1424
  %v1426 = vpop.f32.mrf.mxu0
  %1427 = vmatprep.mubr.bf16.mxu0 0
  %1428 = vmatmul.mubr.bf16.gmra.mxu0 %v1201
  %v1429 = vpop.f32.mrf.mxu0
  %v1430 = vadd.f32 %v1131, %v1429
  %v1431 = vpop.f32.mrf.mxu0
  %v1432 = vpop.f32.mrf.mxu0
  %v1433 = vadd.f32 %v1131, %v1432
  %v1434 = vpop.f32.mrf.mxu0
  %1435 = vmatprep.mubr.bf16.mxu0 0
  %1436 = vmatmul.mubr.bf16.gmra.mxu0 %v1204
  %v1437 = vpop.f32.mrf.mxu0
  %v1438 = vadd.f32 %v1131, %v1437
  %v1439 = vpop.f32.mrf.mxu0
  %v1440 = vpop.f32.mrf.mxu0
  %v1441 = vadd.f32 %v1131, %v1440
  %v1442 = vpop.f32.mrf.mxu0
  %1443 = vmatprep.mubr.bf16.mxu0 0
  %1444 = vmatmul.mubr.bf16.gmra.mxu0 %v1207
  %v1445 = vpop.f32.mrf.mxu0
  %v1446 = vadd.f32 %v1131, %v1445
  %v1447 = vpop.f32.mrf.mxu0
  %v1448 = vpop.f32.mrf.mxu0
  %v1449 = vadd.f32 %v1131, %v1448
  %v1450 = vpop.f32.mrf.mxu0
  %1451 = vmatprep.mubr.bf16.mxu0 0
  %1452 = vmatmul.mubr.bf16.gmra.mxu0 %v1210
  %v1453 = vpop.f32.mrf.mxu0
  %v1454 = vadd.f32 %v1131, %v1453
  %v1455 = vpop.f32.mrf.mxu0
  %v1456 = vpop.f32.mrf.mxu0
  %v1457 = vadd.f32 %v1131, %v1456
  %v1458 = vpop.f32.mrf.mxu0
  %1459 = vmatprep.mubr.bf16.mxu0 0
  %1460 = vmatmul.mubr.bf16.gmra.mxu0 %v1213
  %v1461 = vpop.f32.mrf.mxu0
  %v1462 = vadd.f32 %v1131, %v1461
  %v1463 = vpop.f32.mrf.mxu0
  %v1464 = vpop.f32.mrf.mxu0
  %v1465 = vadd.f32 %v1131, %v1464
  %v1466 = vpop.f32.mrf.mxu0
  %1467 = vmatprep.mubr.bf16.mxu0 0
  %1468 = vmatmul.mubr.bf16.gmra.mxu0 %v1216
  %v1469 = vpop.f32.mrf.mxu0
  %v1470 = vadd.f32 %v1131, %v1469
  %v1471 = vpop.f32.mrf.mxu0
  %v1472 = vpop.f32.mrf.mxu0
  %v1473 = vadd.f32 %v1131, %v1472
  %v1474 = vpop.f32.mrf.mxu0
  %1475 = vmatprep.mubr.bf16.mxu0 0
  %1476 = vmatmul.mubr.bf16.gmra.mxu0 %v1219
  %v1477 = vpop.f32.mrf.mxu0
  %v1478 = vadd.f32 %v1131, %v1477
  %v1479 = vpop.f32.mrf.mxu0
  %v1480 = vpop.f32.mrf.mxu0
  %v1481 = vadd.f32 %v1131, %v1480
  %v1482 = vpop.f32.mrf.mxu0
  %1483 = vmatprep.mubr.bf16.mxu0 0
  %1484 = vmatmul.mubr.bf16.gmra.mxu0 %v1222
  %v1485 = vpop.f32.mrf.mxu0
  %v1486 = vadd.f32 %v1131, %v1485
  %v1487 = vpop.f32.mrf.mxu0
  %v1488 = vpop.f32.mrf.mxu0
  %v1489 = vadd.f32 %v1131, %v1488
  %v1490 = vpop.f32.mrf.mxu0
  %1491 = vmatprep.mubr.bf16.mxu0 0
  %1492 = vmatmul.mubr.bf16.gmra.mxu0 %v1225
  %v1493 = vpop.f32.mrf.mxu0
  %v1494 = vadd.f32 %v1131, %v1493
  %v1495 = vpop.f32.mrf.mxu0
  %v1496 = vpop.f32.mrf.mxu0
  %v1497 = vadd.f32 %v1131, %v1496
  %v1498 = vpop.f32.mrf.mxu0
  %1499 = vmatprep.mubr.bf16.mxu0 0
  %1500 = vmatmul.mubr.bf16.gmra.mxu0 %v1228
  %v1501 = vpop.f32.mrf.mxu0
  %v1502 = vadd.f32 %v1131, %v1501
  %v1503 = vpop.f32.mrf.mxu0
  %v1504 = vpop.f32.mrf.mxu0
  %v1505 = vadd.f32 %v1131, %v1504
  %v1506 = vpop.f32.mrf.mxu0
  %1507 = vmatprep.mubr.bf16.mxu0 0
  %1508 = vmatmul.mubr.bf16.gmra.mxu0 %v1231
  %v1509 = vpop.f32.mrf.mxu0
  %v1510 = vadd.f32 %v1131, %v1509
  %v1511 = vpop.f32.mrf.mxu0
  %v1512 = vpop.f32.mrf.mxu0
  %v1513 = vadd.f32 %v1131, %v1512
  %v1514 = vpop.f32.mrf.mxu0
  %1515 = vmatprep.mubr.bf16.mxu0 0
  %1516 = vmatmul.mubr.bf16.gmra.mxu0 %v1234
  %v1517 = vpop.f32.mrf.mxu0
  %v1518 = vadd.f32 %v1131, %v1517
  %v1519 = vpop.f32.mrf.mxu0
  %v1520 = vpop.f32.mrf.mxu0
  %v1521 = vadd.f32 %v1131, %v1520
  %v1522 = vpop.f32.mrf.mxu0
  %1523 = vmatprep.mubr.bf16.mxu0 0
  %1524 = vmatmul.mubr.bf16.gmra.mxu0 %v1237
  %v1525 = vpop.f32.mrf.mxu0
  %v1526 = vadd.f32 %v1131, %v1525
  %v1527 = vpop.f32.mrf.mxu0
  %v1528 = vpop.f32.mrf.mxu0
  %v1529 = vpop.f32.mrf.mxu0
  %1530 = vdwg.mxu0
  %vm1531 = vcmask 31744
  %1532 = vst.msk [vmem:[%s7] sm:$0xff] %vm1531, %v1278
  %1533 = vst.msk [vmem:[%s7 + $0x8] sm:$0xff] %vm1531, %v1281
  %1534 = vst.msk [vmem:[%s7 + $0x10] sm:$0xff] %vm1531, %v1286
  %1535 = vst.msk [vmem:[%s7 + $0x18] sm:$0xff] %vm1531, %v1289
  %1536 = vst.msk [vmem:[%s7 + $0x20] sm:$0xff] %vm1531, %v1294
  %1537 = vst.msk [vmem:[%s7 + $0x28] sm:$0xff] %vm1531, %v1297
  %1538 = vst.msk [vmem:[%s7 + $0x30] sm:$0xff] %vm1531, %v1302
  %1539 = vst.msk [vmem:[%s7 + $0x38] sm:$0xff] %vm1531, %v1305
  %1540 = vst.msk [vmem:[%s7 + $0x40] sm:$0xff] %vm1531, %v1310
  %1541 = vst.msk [vmem:[%s7 + $0x48] sm:$0xff] %vm1531, %v1313
  %1542 = vst.msk [vmem:[%s7 + $0x50] sm:$0xff] %vm1531, %v1318
  %1543 = vst.msk [vmem:[%s7 + $0x58] sm:$0xff] %vm1531, %v1321
  %1544 = vst.msk [vmem:[%s7 + $0x60] sm:$0xff] %vm1531, %v1326
  %1545 = vst.msk [vmem:[%s7 + $0x68] sm:$0xff] %vm1531, %v1329
  %1546 = vst.msk [vmem:[%s7 + $0x70] sm:$0xff] %vm1531, %v1334
  %1547 = vst.msk [vmem:[%s7 + $0x78] sm:$0xff] %vm1531, %v1337
  %1548 = vst.msk [vmem:[%s7 + $0x80] sm:$0xff] %vm1531, %v1342
  %1549 = vst.msk [vmem:[%s7 + $0x88] sm:$0xff] %vm1531, %v1345
  %1550 = vst.msk [vmem:[%s7 + $0x90] sm:$0xff] %vm1531, %v1350
  %1551 = vst.msk [vmem:[%s7 + $0x98] sm:$0xff] %vm1531, %v1353
  %1552 = vst.msk [vmem:[%s7 + $0xa0] sm:$0xff] %vm1531, %v1358
  %1553 = vst.msk [vmem:[%s7 + $0xa8] sm:$0xff] %vm1531, %v1361
  %1554 = vst.msk [vmem:[%s7 + $0xb0] sm:$0xff] %vm1531, %v1366
  %1555 = vst.msk [vmem:[%s7 + $0xb8] sm:$0xff] %vm1531, %v1369
  %1556 = vst.msk [vmem:[%s7 + $0xc0] sm:$0xff] %vm1531, %v1374
  %1557 = vst.msk [vmem:[%s7 + $0xc8] sm:$0xff] %vm1531, %v1377
  %1558 = vst.msk [vmem:[%s7 + $0xd0] sm:$0xff] %vm1531, %v1382
  %1559 = vst.msk [vmem:[%s7 + $0xd8] sm:$0xff] %vm1531, %v1385
  %1560 = vst.msk [vmem:[%s7 + $0xe0] sm:$0xff] %vm1531, %v1390
  %1561 = vst.msk [vmem:[%s7 + $0xe8] sm:$0xff] %vm1531, %v1393
  %1562 = vst.msk [vmem:[%s7 + $0xf0] sm:$0xff] %vm1531, %v1398
  %1563 = vst.msk [vmem:[%s7 + $0xf8] sm:$0xff] %vm1531, %v1401
  %1564 = vst.msk [vmem:[%s7 + $0x100] sm:$0xff] %vm1531, %v1406
  %1565 = vst.msk [vmem:[%s7 + $0x108] sm:$0xff] %vm1531, %v1409
  %1566 = vst.msk [vmem:[%s7 + $0x110] sm:$0xff] %vm1531, %v1414
  %1567 = vst.msk [vmem:[%s7 + $0x118] sm:$0xff] %vm1531, %v1417
  %1568 = vst.msk [vmem:[%s7 + $0x120] sm:$0xff] %vm1531, %v1422
  %1569 = vst.msk [vmem:[%s7 + $0x128] sm:$0xff] %vm1531, %v1425
  %1570 = vst.msk [vmem:[%s7 + $0x130] sm:$0xff] %vm1531, %v1430
  %1571 = vst.msk [vmem:[%s7 + $0x138] sm:$0xff] %vm1531, %v1433
  %1572 = vst.msk [vmem:[%s7 + $0x140] sm:$0xff] %vm1531, %v1438
  %1573 = vst.msk [vmem:[%s7 + $0x148] sm:$0xff] %vm1531, %v1441
  %1574 = vst.msk [vmem:[%s7 + $0x150] sm:$0xff] %vm1531, %v1446
  %1575 = vst.msk [vmem:[%s7 + $0x158] sm:$0xff] %vm1531, %v1449
  %1576 = vst.msk [vmem:[%s7 + $0x160] sm:$0xff] %vm1531, %v1454
  %1577 = vst.msk [vmem:[%s7 + $0x168] sm:$0xff] %vm1531, %v1457
  %1578 = vst.msk [vmem:[%s7 + $0x170] sm:$0xff] %vm1531, %v1462
  %1579 = vst.msk [vmem:[%s7 + $0x178] sm:$0xff] %vm1531, %v1465
  %1580 = vst.msk [vmem:[%s7 + $0x180] sm:$0xff] %vm1531, %v1470
  %1581 = vst.msk [vmem:[%s7 + $0x188] sm:$0xff] %vm1531, %v1473
  %1582 = vst.msk [vmem:[%s7 + $0x190] sm:$0xff] %vm1531, %v1478
  %1583 = vst.msk [vmem:[%s7 + $0x198] sm:$0xff] %vm1531, %v1481
  %1584 = vst.msk [vmem:[%s7 + $0x1a0] sm:$0xff] %vm1531, %v1486
  %1585 = vst.msk [vmem:[%s7 + $0x1a8] sm:$0xff] %vm1531, %v1489
  %1586 = vst.msk [vmem:[%s7 + $0x1b0] sm:$0xff] %vm1531, %v1494
  %1587 = vst.msk [vmem:[%s7 + $0x1b8] sm:$0xff] %vm1531, %v1497
  %1588 = vst.msk [vmem:[%s7 + $0x1c0] sm:$0xff] %vm1531, %v1502
  %1589 = vst.msk [vmem:[%s7 + $0x1c8] sm:$0xff] %vm1531, %v1505
  %1590 = vst.msk [vmem:[%s7 + $0x1d0] sm:$0xff] %vm1531, %v1510
  %1591 = vst.msk [vmem:[%s7 + $0x1d8] sm:$0xff] %vm1531, %v1513
  %1592 = vst.msk [vmem:[%s7 + $0x1e0] sm:$0xff] %vm1531, %v1518
  %1593 = vst.msk [vmem:[%s7 + $0x1e8] sm:$0xff] %vm1531, %v1521
  %1594 = vst.msk [vmem:[%s7 + $0x1f0] sm:$0xff] %vm1531, %v1526
  // Predicated region
  $region30: #{tpu_custom_call.1} parent=0 // pred_check
    _
  $region31: #{tpu_custom_call.1} parent=0 // pred_check_branch
    %1596 = sbr.rel (0) target = $region33
  $region32: #{tpu_custom_call.1} parent=0 // pred_region
    _
  $region33: #{tpu_custom_call.1} parent=0 // pred_fallthru
    _
  // Predicated region
  $region34: #{tpu_custom_call.1} parent=0 // pred_check
    _
  $region35: #{tpu_custom_call.1} parent=0 // pred_check_branch
    %1598 = sbr.rel (0) target = $region37
  $region36: #{tpu_custom_call.1} parent=0 // pred_region
    _
  $region37: #{tpu_custom_call.1} parent=0 // pred_fallthru
    _

</llo_original>
